<compile_context>
chip_gen: v7x
topology: tpu7x:2x2x1
jax: 0.10.0
libtpu: 0.0.40
codegen_flags: <defaults>
</compile_context>

<pallas_src>
import jax
import jax.numpy as jnp
from jax.experimental import pallas as pl
from jax.experimental.pallas import tpu as pltpu


def _layer1_kernel(a_ref, xw_ref, b1_ref, w2_ref, keep_ref, hw2_ref, acc_ref):
    """Grid (row i, contraction k): acc += A[i,k] @ XW[k]; epilogue applies
    bias + ReLU + dropout and the tiny @W2, storing hW2 as bf16."""
    k = pl.program_id(1)

    @pl.when(k == 0)
    def _():
        acc_ref[...] = jnp.zeros_like(acc_ref)

    # bf16 x bf16 MXU matmul, f32 accumulation.
    acc_ref[...] += jnp.dot(a_ref[...], xw_ref[...],
                            preferred_element_type=jnp.float32)

    @pl.when(k == pl.num_programs(1) - 1)
    def _():
        h = jnp.maximum(acc_ref[...] + b1_ref[...], 0.0)
        # dropout(p=0.5): keep_ref holds bf16 0.0 / 2.0 scales (exact in bf16),
        # drawn per row in the wrapper -> single VPU multiply in-kernel.
        # TODO(synk): replace with pltpu.prng_seed/prng_random_bits here to
        # drop this (small) HBM stream entirely.
        h = h * keep_ref[...].astype(jnp.float32)
        hw2_ref[...] = jnp.dot(h.astype(jnp.bfloat16), w2_ref[...],
                               preferred_element_type=jnp.float32
                               ).astype(hw2_ref.dtype)


def _layer2_kernel(a_ref, hw2_ref, b2_ref, logp_ref, xout_ref, acc_ref):
    """Grid (row i, contraction k): acc += A[i,k] @ hW2[k]; epilogue adds bias
    and computes log_softmax over classes."""
    k = pl.program_id(1)

    @pl.when(k == 0)
    def _():
        acc_ref[...] = jnp.zeros_like(acc_ref)

    acc_ref[...] += jnp.dot(a_ref[...], hw2_ref[...],
                            preferred_element_type=jnp.float32)

    @pl.when(k == pl.num_programs(1) - 1)
    def _():
        x_out = acc_ref[...] + b2_ref[...]
        xout_ref[...] = x_out
        # log_softmax over classes (dim=1), f32 on VPU/EUP.
        m = jnp.max(x_out, axis=1, keepdims=True)
        z = x_out - m
        lse = jnp.log(jnp.sum(jnp.exp(z), axis=1, keepdims=True))
        logp_ref[...] = z - lse


def build_norm_adj(edge_index, num_nodes):
    # Glue (plain JAX): dense GCN-normalized adjacency. Self loops are set to
    # exactly 1.0 (add_remaining_self_loops semantics), even if edge_index
    # already contains them.
    a = jnp.zeros((num_nodes, num_nodes), jnp.float32)
    a = a.at[edge_index[0], edge_index[1]].set(1.0)
    idx = jnp.arange(num_nodes)
    a = a.at[idx, idx].set(1.0)
    deg = jnp.sum(a, axis=1)
    dinv = jnp.where(deg > 0, 1.0 / jnp.sqrt(deg), 0.0)
    return a * dinv[:, None] * dinv[None, :]


def net_forward(x, edge_index, w1, b1, w2, b2, dropout_key, *,
                row_tile=512, k_tile=1024):
    n = x.shape[0]
    f_in, hidden = w1.shape
    n_class = w2.shape[1]

    # ---------- glue (plain JAX) ----------
    a_hat = build_norm_adj(edge_index, n)
    a_bf = a_hat.astype(jnp.bfloat16)        # bf16 MXU operand, f32 accumulate
    # X @ W1 hoisted out of the kernels: only N x hidden, every row tile needs it.
    xw_bf = jnp.dot(x, w1, preferred_element_type=jnp.float32).astype(jnp.bfloat16)
    w2_bf = w2.astype(jnp.bfloat16)
    # dropout keep-scales (0.0 / 2.0, exact in bf16) drawn once in the wrapper.
    keep = jax.random.bernoulli(dropout_key, 0.5, (n, hidden)).astype(jnp.bfloat16) * 2.0

    row_tile = min(row_tile, n)
    k_tile = min(k_tile, n)
    assert n % row_tile == 0 and (row_tile % 16 == 0 or row_tile == n), \
        "row_tile must divide N and be a multiple of 16 (bf16 sublane pack) or equal N"
    assert n % k_tile == 0 and (k_tile % 128 == 0 or k_tile == n), \
        "k_tile must divide N and be a multiple of 128 (lane width) or equal N"
    grid = (n // row_tile, n // k_tile)

    # Row axis "parallel" (megacore / v7x dual TC); contraction axis last and
    # "arbitrary" with an f32 VMEM accumulator. K-tiling was removed as the
    # reason for large resident blocks, so per-spec Buffered(1) single
    # buffering is no longer needed (remaining invariant blocks are tiny).
    cparams = pltpu.CompilerParams(
        dimension_semantics=("parallel", "arbitrary"),
        vmem_limit_bytes=64 * 1024 * 1024,
    )

    # ---------- layer 1: hW2 = dropout(relu(A_hat @ XW + b1)) @ W2 ----------
    hw2 = pl.pallas_call(
        _layer1_kernel,
        out_shape=jax.ShapeDtypeStruct((n, n_class), jnp.bfloat16),
        grid_spec=pltpu.PrefetchScalarGridSpec(
            num_scalar_prefetch=0,
            grid=grid,
            in_specs=[
                pl.BlockSpec((row_tile, k_tile), lambda i, k: (i, k)),    # A tile
                pl.BlockSpec((k_tile, hidden), lambda i, k: (k, 0)),      # XW k-slab
                pl.BlockSpec((1, hidden), lambda i, k: (0, 0)),           # b1
                pl.BlockSpec((hidden, n_class), lambda i, k: (0, 0)),     # W2 (bf16)
                pl.BlockSpec((row_tile, hidden), lambda i, k: (i, 0)),    # keep scale
            ],
            out_specs=pl.BlockSpec((row_tile, n_class), lambda i, k: (i, 0)),
            scratch_shapes=[pltpu.VMEM((row_tile, hidden), jnp.float32)],
        ),
        compiler_params=cparams,
        cost_estimate=pl.CostEstimate(
            flops=2 * n * n * hidden + 2 * n * hidden * n_class,
            transcendentals=0,
            bytes_accessed=(n * n * 2                     # A (bf16)
                            + grid[0] * n * hidden * 2    # XW re-streamed per row tile
                            + n * hidden * 2              # keep scales (bf16)
                            + n * n_class * 2             # hW2 out (bf16)
                            + (hidden + hidden * n_class) * 4),
        ),
    )(a_bf, xw_bf, b1, w2_bf, keep)

    # ---------- layer 2: x_out = A_hat @ hW2 + b2, log_softmax ----------
    logp, x_out = pl.pallas_call(
        _layer2_kernel,
        out_shape=(jax.ShapeDtypeStruct((n, n_class), jnp.float32),
                   jax.ShapeDtypeStruct((n, n_class), jnp.float32)),
        grid_spec=pltpu.PrefetchScalarGridSpec(
            num_scalar_prefetch=0,
            grid=grid,
            in_specs=[
                pl.BlockSpec((row_tile, k_tile), lambda i, k: (i, k)),    # A tile
                pl.BlockSpec((k_tile, n_class), lambda i, k: (k, 0)),     # hW2 k-slab
                pl.BlockSpec((1, n_class), lambda i, k: (0, 0)),          # b2
            ],
            out_specs=(
                pl.BlockSpec((row_tile, n_class), lambda i, k: (i, 0)),
                pl.BlockSpec((row_tile, n_class), lambda i, k: (i, 0)),
            ),
            scratch_shapes=[pltpu.VMEM((row_tile, n_class), jnp.float32)],
        ),
        compiler_params=cparams,
        cost_estimate=pl.CostEstimate(
            flops=2 * n * n * n_class,
            transcendentals=n * (n_class + 1),
            bytes_accessed=(n * n * 2
                            + grid[0] * n * n_class * 2
                            + 2 * n * n_class * 4
                            + n_class * 4),
        ),
    )(a_bf, hw2, b2)

    # ---------- orthogonality penalty (hoisted out of the kernels) ----------
    # Tiny (F x F and 64 x 64) problem: computed once in plain JAX instead of
    # once per grid step inside the layer-2 kernel.
    g1 = jnp.dot(w1, w1.T) - jnp.eye(f_in, dtype=jnp.float32)
    g2 = jnp.dot(w2, w2.T) - jnp.eye(hidden, dtype=jnp.float32)
    ortho = jnp.sqrt(jnp.sum(g1 * g1)) + jnp.sqrt(jnp.sum(g2 * g2))

    return logp, x_out, ortho


if __name__ == "__main__":
    key = jax.random.PRNGKey(0)
    k1, k2, k3, k4, kdrop = jax.random.split(key, 5)

    # N nodes, F = dataset.num_node_features, hidden 64, C = num_classes.
    # N=256 so the 128x128 tiles below exercise a 2x2 (row, contraction) grid,
    # i.e. both the accumulator init/epilogue path and the parallel row axis.
    N, F, H, C = 256, 16, 64, 8
    NUM_EDGES = 512

    x = jax.random.normal(k1, (N, F), dtype=jnp.float32)
    edge_index = jax.random.randint(k2, (2, NUM_EDGES), 0, N, dtype=jnp.int32)

    # deterministic glorot-style init, weights stored [in, out]
    w1 = jax.random.uniform(k3, (F, H), jnp.float32, -1.0, 1.0) * jnp.sqrt(6.0 / (F + H))
    b1 = jnp.zeros((1, H), jnp.float32)
    w2 = jax.random.uniform(k4, (H, C), jnp.float32, -1.0, 1.0) * jnp.sqrt(6.0 / (H + C))
    b2 = jnp.zeros((1, C), jnp.float32)

    fwd = jax.jit(net_forward, static_argnames=("row_tile", "k_tile"))
    # Real graph sizes should use the defaults (row_tile=512, k_tile=1024).
    logp, x_out, ortho = fwd(x, edge_index, w1, b1, w2, b2, kdrop,
                             row_tile=128, k_tile=128)
    jax.block_until_ready((logp, x_out, ortho))
    print("KERNEL_OK")
</pallas_src>

<mosaic_0001>
module attributes {stable_mosaic.version = 11 : i64} {
  func.func @_layer1_kernel(%arg0: i32, %arg1: i32, %arg2: memref<128x128xbf16, #tpu.memory_space<vmem>>, %arg3: memref<128x64xbf16, #tpu.memory_space<vmem>>, %arg4: memref<1x64xf32, #tpu.memory_space<vmem>>, %arg5: memref<64x8xbf16, #tpu.memory_space<vmem>>, %arg6: memref<128x64xbf16, #tpu.memory_space<vmem>>, %arg7: memref<128x8xbf16, #tpu.memory_space<vmem>>, %arg8: memref<128x64xf32, #tpu.memory_space<vmem>>) attributes {dimension_semantics = [#tpu.dimension_semantics<parallel>, #tpu.dimension_semantics<arbitrary>], iteration_bounds = array<i64: 2, 2>, scalar_prefetch = 0 : i64, scratch_operands = 1 : i64, tpu.core_type = #tpu.core_type<tc>, window_params = [{transform_indices = @transform_0, window_bounds = array<i64: 128, 128>}, {transform_indices = @transform_1, window_bounds = array<i64: 128, 64>}, {pipeline_mode = #tpu.pipeline_mode<synchronous>, transform_indices = @transform_2, window_bounds = array<i64: 1, 64>}, {pipeline_mode = #tpu.pipeline_mode<synchronous>, transform_indices = @transform_3, window_bounds = array<i64: 64, 8>}, {transform_indices = @transform_4, window_bounds = array<i64: 128, 64>}, {transform_indices = @transform_5, window_bounds = array<i64: 128, 8>}]} {
    %c0_i32 = arith.constant 0 : i32
    %0 = arith.cmpi eq, %arg1, %c0_i32 : i32
    %1 = arith.extui %0 : i1 to i32
    %c0_i32_0 = arith.constant 0 : i32
    %2 = arith.cmpi ne, %1, %c0_i32_0 : i32
    scf.if %2 {
      %cst_9 = arith.constant 0.000000e+00 : f32
      %12 = vector.broadcast %cst_9 : f32 to vector<128x64xf32>
      %c0_10 = arith.constant 0 : index
      %c0_11 = arith.constant 0 : index
      %13 = vector.load %arg8[%c0_10, %c0_11] : memref<128x64xf32, #tpu.memory_space<vmem>>, vector<128x64xf32>
      tpu.vector_store %arg8[%c0_10, %c0_11], %12 {strides = array<i32>} : memref<128x64xf32, #tpu.memory_space<vmem>>, vector<128x64xf32>,
    } else {
    }
    %c0 = arith.constant 0 : index
    %c0_1 = arith.constant 0 : index
    %3 = vector.load %arg8[%c0, %c0_1] : memref<128x64xf32, #tpu.memory_space<vmem>>, vector<128x64xf32>
    %c0_2 = arith.constant 0 : index
    %c0_3 = arith.constant 0 : index
    %4 = vector.load %arg2[%c0_2, %c0_3] : memref<128x128xbf16, #tpu.memory_space<vmem>>, vector<128x128xbf16>
    %c0_4 = arith.constant 0 : index
    %c0_5 = arith.constant 0 : index
    %5 = vector.load %arg3[%c0_4, %c0_5] : memref<128x64xbf16, #tpu.memory_space<vmem>>, vector<128x64xbf16>
    %cst = arith.constant dense<0.000000e+00> : vector<128x64xf32>
    %6 = tpu.matmul %4, %5, %cst {dimension_numbers = #tpu.dot_dimension_numbers<[1], [0], [0], [1], [0, 0, 1, 1], [], []>} : vector<128x128xbf16>, vector<128x64xbf16>, vector<128x64xf32> -> vector<128x64xf32>
    %7 = arith.addf %3, %6 : vector<128x64xf32>
    %c0_6 = arith.constant 0 : index
    %c0_7 = arith.constant 0 : index
    %8 = vector.load %arg8[%c0_6, %c0_7] : memref<128x64xf32, #tpu.memory_space<vmem>>, vector<128x64xf32>
    tpu.vector_store %arg8[%c0_6, %c0_7], %7 {strides = array<i32>} : memref<128x64xf32, #tpu.memory_space<vmem>>, vector<128x64xf32>,
    %c1_i32 = arith.constant 1 : i32
    %9 = arith.cmpi eq, %arg1, %c1_i32 : i32
    %10 = arith.extui %9 : i1 to i32
    %c0_i32_8 = arith.constant 0 : i32
    %11 = arith.cmpi ne, %10, %c0_i32_8 : i32
    scf.if %11 {
      %c0_9 = arith.constant 0 : index
      %c0_10 = arith.constant 0 : index
      %12 = vector.load %arg8[%c0_9, %c0_10] : memref<128x64xf32, #tpu.memory_space<vmem>>, vector<128x64xf32>
      %c0_11 = arith.constant 0 : index
      %c0_12 = arith.constant 0 : index
      %13 = vector.load %arg4[%c0_11, %c0_12] : memref<1x64xf32, #tpu.memory_space<vmem>>, vector<1x64xf32>
      %14 = vector.broadcast %13 : vector<1x64xf32> to vector<128x64xf32>
      %15 = arith.addf %12, %14 : vector<128x64xf32>
      %cst_13 = arith.constant 0.000000e+00 : f32
      %16 = vector.broadcast %cst_13 : f32 to vector<128x64xf32>
      %17 = arith.maximumf %15, %16 : vector<128x64xf32>
      %c0_14 = arith.constant 0 : index
      %c0_15 = arith.constant 0 : index
      %18 = vector.load %arg6[%c0_14, %c0_15] : memref<128x64xbf16, #tpu.memory_space<vmem>>, vector<128x64xbf16>
      %19 = arith.extf %18 : vector<128x64xbf16> to vector<128x64xf32>
      %20 = arith.mulf %17, %19 : vector<128x64xf32>
      %21 = arith.truncf %20 : vector<128x64xf32> to vector<128x64xbf16>
      %c0_16 = arith.constant 0 : index
      %c0_17 = arith.constant 0 : index
      %22 = vector.load %arg5[%c0_16, %c0_17] : memref<64x8xbf16, #tpu.memory_space<vmem>>, vector<64x8xbf16>
      %cst_18 = arith.constant dense<0.000000e+00> : vector<128x8xf32>
      %23 = tpu.matmul %21, %22, %cst_18 {dimension_numbers = #tpu.dot_dimension_numbers<[1], [0], [0], [1], [0, 0, 1, 1], [], []>} : vector<128x64xbf16>, vector<64x8xbf16>, vector<128x8xf32> -> vector<128x8xf32>
      %24 = arith.truncf %23 : vector<128x8xf32> to vector<128x8xbf16>
      %c0_19 = arith.constant 0 : index
      %c0_20 = arith.constant 0 : index
      %25 = vector.load %arg7[%c0_19, %c0_20] : memref<128x8xbf16, #tpu.memory_space<vmem>>, vector<128x8xbf16>
      tpu.vector_store %arg7[%c0_19, %c0_20], %24 {strides = array<i32>} : memref<128x8xbf16, #tpu.memory_space<vmem>>, vector<128x8xbf16>,
    } else {
    }
    return
  }
  func.func @transform_0(%arg0: i32, %arg1: i32) -> (i32, i32) {
    %c0_i32 = arith.constant 0 : i32
    return %arg0, %arg1 : i32, i32
  }
  func.func @transform_1(%arg0: i32, %arg1: i32) -> (i32, i32) {
    %c0_i32 = arith.constant 0 : i32
    %c0_i32_0 = arith.constant 0 : i32
    return %arg1, %c0_i32 : i32, i32
  }
  func.func @transform_2(%arg0: i32, %arg1: i32) -> (i32, i32) {
    %c0_i32 = arith.constant 0 : i32
    %c0_i32_0 = arith.constant 0 : i32
    %c0_i32_1 = arith.constant 0 : i32
    return %c0_i32, %c0_i32_0 : i32, i32
  }
  func.func @transform_3(%arg0: i32, %arg1: i32) -> (i32, i32) {
    %c0_i32 = arith.constant 0 : i32
    %c0_i32_0 = arith.constant 0 : i32
    %c0_i32_1 = arith.constant 0 : i32
    return %c0_i32, %c0_i32_0 : i32, i32
  }
  func.func @transform_4(%arg0: i32, %arg1: i32) -> (i32, i32) {
    %c0_i32 = arith.constant 0 : i32
    %c0_i32_0 = arith.constant 0 : i32
    return %arg0, %c0_i32 : i32, i32
  }
  func.func @transform_5(%arg0: i32, %arg1: i32) -> (i32, i32) {
    %c0_i32 = arith.constant 0 : i32
    %c0_i32_0 = arith.constant 0 : i32
    return %arg0, %c0_i32 : i32, i32
  }
}

module attributes {stable_mosaic.version = 11 : i64} {
  func.func @_layer2_kernel(%arg0: i32, %arg1: i32, %arg2: memref<128x128xbf16, #tpu.memory_space<vmem>>, %arg3: memref<128x8xbf16, #tpu.memory_space<vmem>>, %arg4: memref<1x8xf32, #tpu.memory_space<vmem>>, %arg5: memref<128x8xf32, #tpu.memory_space<vmem>>, %arg6: memref<128x8xf32, #tpu.memory_space<vmem>>, %arg7: memref<128x8xf32, #tpu.memory_space<vmem>>) attributes {dimension_semantics = [#tpu.dimension_semantics<parallel>, #tpu.dimension_semantics<arbitrary>], iteration_bounds = array<i64: 2, 2>, scalar_prefetch = 0 : i64, scratch_operands = 1 : i64, tpu.core_type = #tpu.core_type<tc>, window_params = [{transform_indices = @transform_0, window_bounds = array<i64: 128, 128>}, {transform_indices = @transform_1, window_bounds = array<i64: 128, 8>}, {pipeline_mode = #tpu.pipeline_mode<synchronous>, transform_indices = @transform_2, window_bounds = array<i64: 1, 8>}, {transform_indices = @transform_3, window_bounds = array<i64: 128, 8>}, {transform_indices = @transform_4, window_bounds = array<i64: 128, 8>}]} {
    %c0_i32 = arith.constant 0 : i32
    %0 = arith.cmpi eq, %arg1, %c0_i32 : i32
    %1 = arith.extui %0 : i1 to i32
    %c0_i32_0 = arith.constant 0 : i32
    %2 = arith.cmpi ne, %1, %c0_i32_0 : i32
    scf.if %2 {
      %cst_9 = arith.constant 0.000000e+00 : f32
      %12 = vector.broadcast %cst_9 : f32 to vector<128x8xf32>
      %c0_10 = arith.constant 0 : index
      %c0_11 = arith.constant 0 : index
      %13 = vector.load %arg7[%c0_10, %c0_11] : memref<128x8xf32, #tpu.memory_space<vmem>>, vector<128x8xf32>
      tpu.vector_store %arg7[%c0_10, %c0_11], %12 {strides = array<i32>} : memref<128x8xf32, #tpu.memory_space<vmem>>, vector<128x8xf32>,
    } else {
    }
    %c0 = arith.constant 0 : index
    %c0_1 = arith.constant 0 : index
    %3 = vector.load %arg7[%c0, %c0_1] : memref<128x8xf32, #tpu.memory_space<vmem>>, vector<128x8xf32>
    %c0_2 = arith.constant 0 : index
    %c0_3 = arith.constant 0 : index
    %4 = vector.load %arg2[%c0_2, %c0_3] : memref<128x128xbf16, #tpu.memory_space<vmem>>, vector<128x128xbf16>
    %c0_4 = arith.constant 0 : index
    %c0_5 = arith.constant 0 : index
    %5 = vector.load %arg3[%c0_4, %c0_5] : memref<128x8xbf16, #tpu.memory_space<vmem>>, vector<128x8xbf16>
    %cst = arith.constant dense<0.000000e+00> : vector<128x8xf32>
    %6 = tpu.matmul %4, %5, %cst {dimension_numbers = #tpu.dot_dimension_numbers<[1], [0], [0], [1], [0, 0, 1, 1], [], []>} : vector<128x128xbf16>, vector<128x8xbf16>, vector<128x8xf32> -> vector<128x8xf32>
    %7 = arith.addf %3, %6 : vector<128x8xf32>
    %c0_6 = arith.constant 0 : index
    %c0_7 = arith.constant 0 : index
    %8 = vector.load %arg7[%c0_6, %c0_7] : memref<128x8xf32, #tpu.memory_space<vmem>>, vector<128x8xf32>
    tpu.vector_store %arg7[%c0_6, %c0_7], %7 {strides = array<i32>} : memref<128x8xf32, #tpu.memory_space<vmem>>, vector<128x8xf32>,
    %c1_i32 = arith.constant 1 : i32
    %9 = arith.cmpi eq, %arg1, %c1_i32 : i32
    %10 = arith.extui %9 : i1 to i32
    %c0_i32_8 = arith.constant 0 : i32
    %11 = arith.cmpi ne, %10, %c0_i32_8 : i32
    scf.if %11 {
      %c0_9 = arith.constant 0 : index
      %c0_10 = arith.constant 0 : index
      %12 = vector.load %arg7[%c0_9, %c0_10] : memref<128x8xf32, #tpu.memory_space<vmem>>, vector<128x8xf32>
      %c0_11 = arith.constant 0 : index
      %c0_12 = arith.constant 0 : index
      %13 = vector.load %arg4[%c0_11, %c0_12] : memref<1x8xf32, #tpu.memory_space<vmem>>, vector<1x8xf32>
      %14 = vector.broadcast %13 : vector<1x8xf32> to vector<128x8xf32>
      %15 = arith.addf %12, %14 : vector<128x8xf32>
      %c0_13 = arith.constant 0 : index
      %c0_14 = arith.constant 0 : index
      %16 = vector.load %arg6[%c0_13, %c0_14] : memref<128x8xf32, #tpu.memory_space<vmem>>, vector<128x8xf32>
      tpu.vector_store %arg6[%c0_13, %c0_14], %15 {strides = array<i32>} : memref<128x8xf32, #tpu.memory_space<vmem>>, vector<128x8xf32>,
      %cst_15 = arith.constant dense<0xFF800000> : vector<128xf32>
      %17 = vector.multi_reduction <maximumf>, %15, %cst_15 [1] : vector<128x8xf32> to vector<128xf32>
      %18 = vector.shape_cast %17 : vector<128xf32> to vector<128x1xf32>
      %19 = vector.broadcast %18 : vector<128x1xf32> to vector<128x8xf32>
      %20 = arith.subf %15, %19 : vector<128x8xf32>
      %21 = math.exp %20 : vector<128x8xf32>
      %cst_16 = arith.constant dense<0.000000e+00> : vector<128xf32>
      %22 = vector.multi_reduction <add>, %21, %cst_16 [1] : vector<128x8xf32> to vector<128xf32>
      %23 = vector.shape_cast %22 : vector<128xf32> to vector<128x1xf32>
      %24 = math.log %23 : vector<128x1xf32>
      %25 = vector.broadcast %24 : vector<128x1xf32> to vector<128x8xf32>
      %26 = arith.subf %20, %25 : vector<128x8xf32>
      %c0_17 = arith.constant 0 : index
      %c0_18 = arith.constant 0 : index
      %27 = vector.load %arg5[%c0_17, %c0_18] : memref<128x8xf32, #tpu.memory_space<vmem>>, vector<128x8xf32>
      tpu.vector_store %arg5[%c0_17, %c0_18], %26 {strides = array<i32>} : memref<128x8xf32, #tpu.memory_space<vmem>>, vector<128x8xf32>,
    } else {
    }
    return
  }
  func.func @transform_0(%arg0: i32, %arg1: i32) -> (i32, i32) {
    %c0_i32 = arith.constant 0 : i32
    return %arg0, %arg1 : i32, i32
  }
  func.func @transform_1(%arg0: i32, %arg1: i32) -> (i32, i32) {
    %c0_i32 = arith.constant 0 : i32
    %c0_i32_0 = arith.constant 0 : i32
    return %arg1, %c0_i32 : i32, i32
  }
  func.func @transform_2(%arg0: i32, %arg1: i32) -> (i32, i32) {
    %c0_i32 = arith.constant 0 : i32
    %c0_i32_0 = arith.constant 0 : i32
    %c0_i32_1 = arith.constant 0 : i32
    return %c0_i32, %c0_i32_0 : i32, i32
  }
  func.func @transform_3(%arg0: i32, %arg1: i32) -> (i32, i32) {
    %c0_i32 = arith.constant 0 : i32
    %c0_i32_0 = arith.constant 0 : i32
    return %arg0, %c0_i32 : i32, i32
  }
  func.func @transform_4(%arg0: i32, %arg1: i32) -> (i32, i32) {
    %c0_i32 = arith.constant 0 : i32
    %c0_i32_0 = arith.constant 0 : i32
    return %arg0, %c0_i32 : i32, i32
  }
}

</mosaic_0001>

<llo_original>
// kernel: net_forward.2
$region0: #{net_forward.2}
  #allocation0 [shape = 'u32[]', space=smem, size = 0x4, offset = 0x4, fixed_abs, tag = 'smem constant byte address 0x4 - core index']
  #allocation1 [shape = 'u32[144,128]{1,0:T(1,128)}', space=vmem, size = 0x12000, scoped, tag = 'internal scratch']
  #allocation2 [shape = 'f32[128,64]{1,0:T(8,128)}', space=vmem, size = 0x10000, scoped, tag = 'scratch operand']
  %s0 = inlined_call_operand.hbm [shape: bf16[256,256], index: 0, kind: input, shape index: {}]
  %s1 = inlined_call_operand.hbm [shape: bf16[256,64], index: 1, kind: input, shape index: {}]
  %s2 = inlined_call_operand.hbm [shape: f32[1,64], index: 2, kind: input, shape index: {}]
  %s3 = inlined_call_operand.hbm [shape: bf16[64,8], index: 3, kind: input, shape index: {}]
  %s4 = inlined_call_operand.hbm [shape: bf16[256,64], index: 4, kind: input, shape index: {}]
  %s5 = inlined_call_operand.hbm [shape: bf16[256,8], index: 5, kind: output, shape index: {}]
  %s6 = sld [smem:[#allocation0]]
  $region81: #{net_forward.2} parent=0
    _
  %s8 = ssub.s32 1, %s6
  %s9 = scalar_select 0, %s8, %s6
  $region1: #{net_forward.2} parent=0
    #allocation3 [shape = 'u8[65536]{0}', space=vmem, size = 0x10000, scoped, tag = 'input window, operand 0']
    #allocation4 [shape = 's32[2]{0}', space=sflag, size = 0x8, scoped, tag = 'scoped memory for net_forward.2']
    #allocation5 [shape = 's32[2]{0}', space=sflag, size = 0x8, scoped, tag = 'scoped memory for net_forward.2']
    #allocation6 [shape = 'u8[65536]{0}', space=vmem, size = 0x10000, scoped, tag = 'input window, operand 1']
    #allocation7 [shape = 's32[2]{0}', space=sflag, size = 0x8, scoped, tag = 'scoped memory for net_forward.2']
    #allocation8 [shape = 'u8[512]{0}', space=vmem, size = 0x400, scoped, tag = 'input window, operand 2, single buffered']
    #allocation9 [shape = 'u8[16384]{0}', space=vmem, size = 0x4000, scoped, tag = 'input window, operand 3, single buffered']
    #allocation10 [shape = 's32[1]{0}', space=sflag, size = 0x4, scoped, tag = 'scoped memory for net_forward.2']
    #allocation11 [shape = 'u8[65536]{0}', space=vmem, size = 0x10000, scoped, tag = 'input window, operand 4']
    #allocation12 [shape = 'u8[65536]{0}', space=vmem, size = 0x10000, scoped, tag = 'output window, operand 0']
    %10 = vsyncpa [#allocation4], 0
    %s11 = scalar_lea.sflag [#allocation4], 1
    %12 = vsyncpa %s11, 0
    %13 = vsyncpa [#allocation7], 0
    %s14 = scalar_lea.sflag [#allocation7], 1
    %15 = vsyncpa %s14, 0
    %16 = vsyncpa [#allocation10], 0
    %17 = vsyncpa [#allocation5], 0
    %s18 = scalar_lea.sflag [#allocation5], 1
    %19 = vsyncpa %s18, 0
    loop: start=0, step=1, limit=6
    $region2: #{net_forward.2} parent=1 // loop_pre_header
      _
    $region3: #{net_forward.2} parent=1 // loop_header
      %s21 = sphi 0, %s25
      %p22 = scmp.ge.s32.totalorder %s21, 6
      %s28 = sphi 0, %s40
      %s29 = sphi 0, %s36
      %s30 = sphi 0, %s28
      %s31 = sphi 0, %s29
      %s32 = sphi 0, %s30
      %s33 = sphi 0, %s31
      %s45 = sphi 0, %s47
      %s48 = sphi 0, %s45
      %s49 = sphi 0, %s48
      %s65 = sphi 0, %s49
      %s71 = sphi 0, %s73
      %s74 = sphi 0, %s71
      %s75 = sphi 0, %s74
      %s91 = sphi 0, %s75
      %s95 = sphi 0, %s95
      %s97 = sphi 0, %s95
      %s98 = sphi 0, %s97
      %s112 = sphi 0, %s98
      %s116 = sphi 0, %s116
      %s118 = sphi 0, %s116
      %s119 = sphi 0, %s118
      %s133 = sphi 0, %s119
      %s139 = sphi 0, %s141
      %s142 = sphi 0, %s139
      %s143 = sphi 0, %s142
      %s159 = sphi 0, %s143
      %s165 = sphi 0, %s167
      %s168 = sphi 0, %s165
      %s169 = sphi 0, %s168
      %s185 = sphi 0, %s169
    $region4: #{net_forward.2} parent=1 // loop_header_branch
      %24 = sbr.rel (%p22) target = $region8
    $region5: #{net_forward.2} parent=1 // loop_body
      %s26 = ssub.s32 %s21, 1
      %s27 = ssub.s32 %s21, 2
      %s34 = sadd.s32 1, %s29
      %p35 = scmp.ge.s32.totalorder %s34, 2
      %s36 = scalar_select %p35, 0, %s34
      %s37 = sadd.s32 1, %s28
      %s38 = scalar_select %p35, %s37, %s28
      %p39 = scmp.ge.s32.totalorder %s38, 2
      %s40 = scalar_select %p39, 0, %s38
      %s41 = ssub.s32 %s28, %s40
      %s42 = ssub.s32 %s29, %s36
      %s43 = sor.u32 %s41, %s42
      %p44 = scmp.eq.s32.totalorder %s43, 0
      %s46 = sadd.s32 %s45, 1
      %s47 = scalar_select %p44, %s45, %s46
      %p50 = pneg %p44
      %p51 = scmp.eq.s32.totalorder %s21, 3
      %p52 = por %p50, %p51
      %p53 = scmp.ne.s32.totalorder %s45, %s48
      %p54 = scmp.eq.s32.totalorder %s21, 0
      %p55 = por %p53, %p54
      %p56 = scmp.ne.s32.totalorder %s45, %s48
      %p57 = scmp.eq.s32.totalorder %s26, 3
      %p58 = por %p56, %p57
      %p59 = scmp.ne.s32.totalorder %s48, %s49
      %p60 = scmp.eq.s32.totalorder %s26, 0
      %p61 = por %p59, %p60
      %p62 = scmp.ne.s32.totalorder %s48, %s49
      %p63 = scmp.eq.s32.totalorder %s27, 3
      %p64 = por %p62, %p63
      %p66 = scmp.ne.s32.totalorder %s49, %s65
      %p67 = scmp.eq.s32.totalorder %s27, 0
      %p68 = por %p66, %p67
      %s69 = ssub.s32 %s29, %s36
      %p70 = scmp.eq.s32.totalorder %s69, 0
      %s72 = sadd.s32 %s71, 1
      %s73 = scalar_select %p70, %s71, %s72
      %p76 = pneg %p70
      %p77 = scmp.eq.s32.totalorder %s21, 3
      %p78 = por %p76, %p77
      %p79 = scmp.ne.s32.totalorder %s71, %s74
      %p80 = scmp.eq.s32.totalorder %s21, 0
      %p81 = por %p79, %p80
      %p82 = scmp.ne.s32.totalorder %s71, %s74
      %p83 = scmp.eq.s32.totalorder %s26, 3
      %p84 = por %p82, %p83
      %p85 = scmp.ne.s32.totalorder %s74, %s75
      %p86 = scmp.eq.s32.totalorder %s26, 0
      %p87 = por %p85, %p86
      %p88 = scmp.ne.s32.totalorder %s74, %s75
      %p89 = scmp.eq.s32.totalorder %s27, 3
      %p90 = por %p88, %p89
      %p92 = scmp.ne.s32.totalorder %s75, %s91
      %p93 = scmp.eq.s32.totalorder %s27, 0
      %p94 = por %p92, %p93
      %s96 = sadd.s32 %s95, 1
      %p99 = scmp.eq.s32.totalorder %s21, 3
      %p100 = scmp.ne.s32.totalorder %s95, %s97
      %p101 = scmp.eq.s32.totalorder %s21, 0
      %p102 = por %p100, %p101
      %p103 = scmp.ne.s32.totalorder %s95, %s97
      %p104 = scmp.eq.s32.totalorder %s26, 3
      %p105 = por %p103, %p104
      %p106 = scmp.ne.s32.totalorder %s97, %s98
      %p107 = scmp.eq.s32.totalorder %s26, 0
      %p108 = por %p106, %p107
      %p109 = scmp.ne.s32.totalorder %s97, %s98
      %p110 = scmp.eq.s32.totalorder %s27, 3
      %p111 = por %p109, %p110
      %p113 = scmp.ne.s32.totalorder %s98, %s112
      %p114 = scmp.eq.s32.totalorder %s27, 0
      %p115 = por %p113, %p114
      %s117 = sadd.s32 %s116, 1
      %p120 = scmp.eq.s32.totalorder %s21, 3
      %p121 = scmp.ne.s32.totalorder %s116, %s118
      %p122 = scmp.eq.s32.totalorder %s21, 0
      %p123 = por %p121, %p122
      %p124 = scmp.ne.s32.totalorder %s116, %s118
      %p125 = scmp.eq.s32.totalorder %s26, 3
      %p126 = por %p124, %p125
      %p127 = scmp.ne.s32.totalorder %s118, %s119
      %p128 = scmp.eq.s32.totalorder %s26, 0
      %p129 = por %p127, %p128
      %p130 = scmp.ne.s32.totalorder %s118, %s119
      %p131 = scmp.eq.s32.totalorder %s27, 3
      %p132 = por %p130, %p131
      %p134 = scmp.ne.s32.totalorder %s119, %s133
      %p135 = scmp.eq.s32.totalorder %s27, 0
      %p136 = por %p134, %p135
      %s137 = ssub.s32 %s28, %s40
      %p138 = scmp.eq.s32.totalorder %s137, 0
      %s140 = sadd.s32 %s139, 1
      %s141 = scalar_select %p138, %s139, %s140
      %p144 = pneg %p138
      %p145 = scmp.eq.s32.totalorder %s21, 3
      %p146 = por %p144, %p145
      %p147 = scmp.ne.s32.totalorder %s139, %s142
      %p148 = scmp.eq.s32.totalorder %s21, 0
      %p149 = por %p147, %p148
      %p150 = scmp.ne.s32.totalorder %s139, %s142
      %p151 = scmp.eq.s32.totalorder %s26, 3
      %p152 = por %p150, %p151
      %p153 = scmp.ne.s32.totalorder %s142, %s143
      %p154 = scmp.eq.s32.totalorder %s26, 0
      %p155 = por %p153, %p154
      %p156 = scmp.ne.s32.totalorder %s142, %s143
      %p157 = scmp.eq.s32.totalorder %s27, 3
      %p158 = por %p156, %p157
      %p160 = scmp.ne.s32.totalorder %s143, %s159
      %p161 = scmp.eq.s32.totalorder %s27, 0
      %p162 = por %p160, %p161
      %s163 = ssub.s32 %s28, %s40
      %p164 = scmp.eq.s32.totalorder %s163, 0
      %s166 = sadd.s32 %s165, 1
      %s167 = scalar_select %p164, %s165, %s166
      %p170 = pneg %p164
      %p171 = scmp.eq.s32.totalorder %s21, 3
      %p172 = por %p170, %p171
      %p173 = scmp.ne.s32.totalorder %s165, %s168
      %p174 = scmp.eq.s32.totalorder %s21, 0
      %p175 = por %p173, %p174
      %p176 = scmp.ne.s32.totalorder %s165, %s168
      %p177 = scmp.eq.s32.totalorder %s26, 3
      %p178 = por %p176, %p177
      %p179 = scmp.ne.s32.totalorder %s168, %s169
      %p180 = scmp.eq.s32.totalorder %s26, 0
      %p181 = por %p179, %p180
      %p182 = scmp.ne.s32.totalorder %s168, %s169
      %p183 = scmp.eq.s32.totalorder %s27, 3
      %p184 = por %p182, %p183
      %p186 = scmp.ne.s32.totalorder %s169, %s185
      %p187 = scmp.eq.s32.totalorder %s27, 0
      %p188 = por %p186, %p187
      %p189 = scmp.le.s32.totalorder 1, %s21
      %p190 = scmp.lt.s32.totalorder %s21, 5
      %p191 = pnand %p189, %p190
      %p192 = pneg %p191
      // Predicated region
      $region9: #{net_forward.2} parent=5 // pred_check
        _
      $region10: #{net_forward.2} parent=5 // pred_check_branch
        %194 = sbr.rel (%p191) target = $region12
      $region11: #{net_forward.2} parent=5 // pred_region
        %s195 = ssub.s32 %s21, 1
        // Predicated region
        $region13: #{net_forward.2} parent=11 // pred_check
          %p196 = pneg %p108
        $region14: #{net_forward.2} parent=11 // pred_check_branch
          %198 = sbr.rel (%p196) target = $region16
        $region15: #{net_forward.2} parent=11 // pred_region
          %s200 = ssub.s32 16, 16
          %201 = vsyncadd [#allocation7], %s200
          %s203 = sshll.u32 [#allocation8], 4
          %s204 = int_to_ptr.vmem [resolvable:$true] %s203
          %206 = dma.hbm_to_vmem [thread:$0]  %s2, 16, %s204, [#allocation7]
        $region16: #{net_forward.2} parent=11 // pred_fallthru
          _
        // Predicated region
        $region17: #{net_forward.2} parent=11 // pred_check
          %p207 = pneg %p129
        $region18: #{net_forward.2} parent=11 // pred_check_branch
          %209 = sbr.rel (%p207) target = $region20
        $region19: #{net_forward.2} parent=11 // pred_region
          %s211 = ssub.s32 512, 512
          %212 = vsyncadd [#allocation10], %s211
          %s213 = sshll.u32 [#allocation9], 4
          %s214 = int_to_ptr.vmem [resolvable:$true] %s213
          %219 = dma.hbm_to_vmem [thread:$0]  %s3, 512, %s214, [#allocation10], 64, 64, 4
        $region20: #{net_forward.2} parent=11 // pred_fallthru
          _
      $region12: #{net_forward.2} parent=5 // pred_fallthru
        _
      %p220 = scmp.lt.s32.totalorder %s21, 4
      // Predicated region
      $region21: #{net_forward.2} parent=5 // pred_check
        %p221 = pneg %p220
      $region22: #{net_forward.2} parent=5 // pred_check_branch
        %223 = sbr.rel (%p221) target = $region24
      $region23: #{net_forward.2} parent=5 // pred_region
        // Predicated region
        $region25: #{net_forward.2} parent=23 // pred_check
          %p224 = pneg %p55
        $region26: #{net_forward.2} parent=23 // pred_check_branch
          %226 = sbr.rel (%p224) target = $region28
        $region27: #{net_forward.2} parent=23 // pred_region
          %s227 = sand.u32 %s21, 1
          %s228 = scalar_lea.sflag [#allocation4], %s227
          %s229 = sand.u32 %s45, 1
          %s230 = smul.addr %s229, 64
          %s231 = scalar_lea.vmem [#allocation3], %s230
          %s232 = smul.u32 16, %s28
          %s234 = ssub.s32 1024, 1024
          %235 = vsyncadd %s228, %s234
          %s236 = smul.addr %s232, 2
          %s237 = sadd.s32 %s29, %s236
          %s238 = smul.addr %s237, 64
          %s239 = scalar_lea.hbm %s0, %s238
          %s240 = sshll.u32 %s231, 4
          %s241 = int_to_ptr.vmem [resolvable:$true] %s240
          %246 = dma.hbm_to_vmem [thread:$0]  %s239, 1024, %s241, %s228, 128, 64, 4
        $region28: #{net_forward.2} parent=23 // pred_fallthru
          _
        // Predicated region
        $region29: #{net_forward.2} parent=23 // pred_check
          %p247 = pneg %p81
        $region30: #{net_forward.2} parent=23 // pred_check_branch
          %249 = sbr.rel (%p247) target = $region32
        $region31: #{net_forward.2} parent=23 // pred_region
          %s250 = sand.u32 %s21, 1
          %s251 = scalar_lea.sflag [#allocation7], %s250
          %s252 = sand.u32 %s71, 1
          %s253 = smul.addr %s252, 64
          %s254 = scalar_lea.vmem [#allocation6], %s253
          %s255 = smul.u32 16, %s29
          %s257 = ssub.s32 1024, 1024
          %258 = vsyncadd %s251, %s257
          %s259 = smul.addr %s255, 64
          %s260 = scalar_lea.hbm %s1, %s259
          %s261 = sshll.u32 %s254, 4
          %s262 = int_to_ptr.vmem [resolvable:$true] %s261
          %267 = dma.hbm_to_vmem [thread:$0]  %s260, 1024, %s262, %s251, 64, 64, 4
        $region32: #{net_forward.2} parent=23 // pred_fallthru
          _
        // Predicated region
        $region33: #{net_forward.2} parent=23 // pred_check
          %p268 = pneg %p149
        $region34: #{net_forward.2} parent=23 // pred_check_branch
          %270 = sbr.rel (%p268) target = $region36
        $region35: #{net_forward.2} parent=23 // pred_region
          %s271 = sand.u32 %s21, 1
          %s272 = scalar_lea.sflag [#allocation4], %s271
          %s273 = sand.u32 %s139, 1
          %s274 = smul.addr %s273, 64
          %s275 = scalar_lea.vmem [#allocation11], %s274
          %s276 = smul.u32 16, %s28
          %s278 = ssub.s32 1024, 1024
          %279 = vsyncadd %s272, %s278
          %s280 = smul.addr %s276, 64
          %s281 = scalar_lea.hbm %s4, %s280
          %s282 = sshll.u32 %s275, 4
          %s283 = int_to_ptr.vmem [resolvable:$true] %s282
          %288 = dma.hbm_to_vmem [thread:$0]  %s281, 1024, %s283, %s272, 64, 64, 4
        $region36: #{net_forward.2} parent=23 // pred_fallthru
          _
      $region24: #{net_forward.2} parent=5 // pred_fallthru
        _
      %p289 = scmp.le.s32.totalorder 1, %s21
      %p290 = scmp.lt.s32.totalorder %s21, 5
      %p291 = pnand %p289, %p290
      %p292 = pneg %p291
      // Predicated region
      $region37: #{net_forward.2} parent=5 // pred_check
        _
      $region38: #{net_forward.2} parent=5 // pred_check_branch
        %294 = sbr.rel (%p291) target = $region40
      $region39: #{net_forward.2} parent=5 // pred_region
        %s295 = ssub.s32 %s21, 1
        %s296 = sand.u32 %s26, 1
        %s297 = scalar_lea.sflag [#allocation4], %s296
        %s298 = sand.u32 %s48, 1
        %s299 = smul.addr %s298, 64
        %s300 = scalar_lea.vmem [#allocation3], %s299
        // Predicated region
        $region41: #{net_forward.2} parent=39 // pred_check
          %p301 = pneg %p61
        $region42: #{net_forward.2} parent=39 // pred_check_branch
          %303 = sbr.rel (%p301) target = $region44
        $region43: #{net_forward.2} parent=39 // pred_region
          %304 = dma.done %s297, 1024
        $region44: #{net_forward.2} parent=39 // pred_fallthru
          _
        %s305 = sand.u32 %s26, 1
        %s306 = scalar_lea.sflag [#allocation7], %s305
        %s307 = sand.u32 %s74, 1
        %s308 = smul.addr %s307, 64
        %s309 = scalar_lea.vmem [#allocation6], %s308
        // Predicated region
        $region45: #{net_forward.2} parent=39 // pred_check
          %p310 = pneg %p87
        $region46: #{net_forward.2} parent=39 // pred_check_branch
          %312 = sbr.rel (%p310) target = $region48
        $region47: #{net_forward.2} parent=39 // pred_region
          %313 = dma.done %s306, 1024
        $region48: #{net_forward.2} parent=39 // pred_fallthru
          _
        // Predicated region
        $region49: #{net_forward.2} parent=39 // pred_check
          %p314 = pneg %p108
        $region50: #{net_forward.2} parent=39 // pred_check_branch
          %316 = sbr.rel (%p314) target = $region52
        $region51: #{net_forward.2} parent=39 // pred_region
          %317 = dma.done [#allocation7], 16
        $region52: #{net_forward.2} parent=39 // pred_fallthru
          _
        // Predicated region
        $region53: #{net_forward.2} parent=39 // pred_check
          %p318 = pneg %p129
        $region54: #{net_forward.2} parent=39 // pred_check_branch
          %320 = sbr.rel (%p318) target = $region56
        $region55: #{net_forward.2} parent=39 // pred_region
          %321 = dma.done [#allocation10], 512
        $region56: #{net_forward.2} parent=39 // pred_fallthru
          _
        %s322 = sand.u32 %s26, 1
        %s323 = scalar_lea.sflag [#allocation4], %s322
        %s324 = sand.u32 %s142, 1
        %s325 = smul.addr %s324, 64
        %s326 = scalar_lea.vmem [#allocation11], %s325
        // Predicated region
        $region57: #{net_forward.2} parent=39 // pred_check
          %p327 = pneg %p155
        $region58: #{net_forward.2} parent=39 // pred_check_branch
          %329 = sbr.rel (%p327) target = $region60
        $region59: #{net_forward.2} parent=39 // pred_region
          %330 = dma.done %s323, 1024
        $region60: #{net_forward.2} parent=39 // pred_fallthru
          _
        %s331 = sand.u32 %s26, 1
        %s332 = scalar_lea.sflag [#allocation4], %s331
        %s333 = sand.u32 %s48, 1
        %s334 = smul.addr %s333, 64
        %s335 = scalar_lea.vmem [#allocation3], %s334
        %p336 = pneg %p61
        %p337 = pneg %p58
        %s338 = sand.u32 %s26, 1
        %s339 = scalar_lea.sflag [#allocation7], %s338
        %s340 = sand.u32 %s74, 1
        %s341 = smul.addr %s340, 64
        %s342 = scalar_lea.vmem [#allocation6], %s341
        %p343 = pneg %p87
        %p344 = pneg %p84
        %p345 = pneg %p108
        %p346 = pneg %p105
        %p347 = pneg %p129
        %p348 = pneg %p126
        %s349 = sand.u32 %s26, 1
        %s350 = scalar_lea.sflag [#allocation4], %s349
        %s351 = sand.u32 %s142, 1
        %s352 = smul.addr %s351, 64
        %s353 = scalar_lea.vmem [#allocation11], %s352
        %p354 = pneg %p155
        %p355 = pneg %p152
        %p356 = pneg %p181
        %p357 = pneg %p178
        %s358 = sand.u32 %s168, 1
        %s359 = scalar_lea.sflag [#allocation5], %s358
        %s360 = sand.u32 %s168, 1
        %s361 = smul.addr %s360, 64
        %s362 = scalar_lea.vmem [#allocation12], %s361
        %s363 = smul.u32 16, %s30
        %s364 = smul.u32 16, %s31
        %s365 = smul.u32 16, %s30
        %s366 = smul.u32 16, %s30
        %p368 = scmp.eq.s32.totalorder %s31, 0
        // Predicated region
        $region61: #{net_forward.2} parent=39 // pred_check
          %p369 = pneg %p368
        $region62: #{net_forward.2} parent=39 // pred_check_branch
          %371 = sbr.rel (%p369) target = $region64
        $region63: #{net_forward.2} parent=39 // pred_region
          %vm372 = vcmask 523264
          %373 = vst.msk [vmem:[#allocation2] sm:$0xff] %vm372, 0.0
          %374 = vst.msk [vmem:[#allocation2 + $0x8] sm:$0xff] %vm372, 0.0
          %375 = vst.msk [vmem:[#allocation2 + $0x10] sm:$0xff] %vm372, 0.0
          %376 = vst.msk [vmem:[#allocation2 + $0x18] sm:$0xff] %vm372, 0.0
          %377 = vst.msk [vmem:[#allocation2 + $0x20] sm:$0xff] %vm372, 0.0
          %378 = vst.msk [vmem:[#allocation2 + $0x28] sm:$0xff] %vm372, 0.0
          %379 = vst.msk [vmem:[#allocation2 + $0x30] sm:$0xff] %vm372, 0.0
          %380 = vst.msk [vmem:[#allocation2 + $0x38] sm:$0xff] %vm372, 0.0
          %381 = vst.msk [vmem:[#allocation2 + $0x40] sm:$0xff] %vm372, 0.0
          %382 = vst.msk [vmem:[#allocation2 + $0x48] sm:$0xff] %vm372, 0.0
          %383 = vst.msk [vmem:[#allocation2 + $0x50] sm:$0xff] %vm372, 0.0
          %384 = vst.msk [vmem:[#allocation2 + $0x58] sm:$0xff] %vm372, 0.0
          %385 = vst.msk [vmem:[#allocation2 + $0x60] sm:$0xff] %vm372, 0.0
          %386 = vst.msk [vmem:[#allocation2 + $0x68] sm:$0xff] %vm372, 0.0
          %387 = vst.msk [vmem:[#allocation2 + $0x70] sm:$0xff] %vm372, 0.0
          %388 = vst.msk [vmem:[#allocation2 + $0x78] sm:$0xff] %vm372, 0.0
        $region64: #{net_forward.2} parent=39 // pred_fallthru
          _
        %v389 = vld [vmem:[#allocation2] sm:$0xff]
        %v390 = vld [vmem:[#allocation2 + $0x8] sm:$0xff]
        %v391 = vld [vmem:[#allocation2 + $0x10] sm:$0xff]
        %v392 = vld [vmem:[#allocation2 + $0x18] sm:$0xff]
        %v393 = vld [vmem:[#allocation2 + $0x20] sm:$0xff]
        %v394 = vld [vmem:[#allocation2 + $0x28] sm:$0xff]
        %v395 = vld [vmem:[#allocation2 + $0x30] sm:$0xff]
        %v396 = vld [vmem:[#allocation2 + $0x38] sm:$0xff]
        %v397 = vld [vmem:[#allocation2 + $0x40] sm:$0xff]
        %v398 = vld [vmem:[#allocation2 + $0x48] sm:$0xff]
        %v399 = vld [vmem:[#allocation2 + $0x50] sm:$0xff]
        %v400 = vld [vmem:[#allocation2 + $0x58] sm:$0xff]
        %v401 = vld [vmem:[#allocation2 + $0x60] sm:$0xff]
        %v402 = vld [vmem:[#allocation2 + $0x68] sm:$0xff]
        %v403 = vld [vmem:[#allocation2 + $0x70] sm:$0xff]
        %v404 = vld [vmem:[#allocation2 + $0x78] sm:$0xff]
        %v405 = vld [vmem:[%s300] sm:$0xf]
        %v406 = vld [vmem:[%s300 + $0x4] sm:$0xf]
        %v407 = vld [vmem:[%s300 + $0x8] sm:$0xf]
        %v408 = vld [vmem:[%s300 + $0xc] sm:$0xf]
        %v409 = vld [vmem:[%s300 + $0x10] sm:$0xf]
        %v410 = vld [vmem:[%s300 + $0x14] sm:$0xf]
        %v411 = vld [vmem:[%s300 + $0x18] sm:$0xf]
        %v412 = vld [vmem:[%s300 + $0x1c] sm:$0xf]
        %v413 = vld [vmem:[%s300 + $0x20] sm:$0xf]
        %v414 = vld [vmem:[%s300 + $0x24] sm:$0xf]
        %v415 = vld [vmem:[%s300 + $0x28] sm:$0xf]
        %v416 = vld [vmem:[%s300 + $0x2c] sm:$0xf]
        %v417 = vld [vmem:[%s300 + $0x30] sm:$0xf]
        %v418 = vld [vmem:[%s300 + $0x34] sm:$0xf]
        %v419 = vld [vmem:[%s300 + $0x38] sm:$0xf]
        %v420 = vld [vmem:[%s300 + $0x3c] sm:$0xf]
        %v421 = vld [vmem:[%s309] sm:$0xf]
        %v422 = vld [vmem:[%s309 + $0x4] sm:$0xf]
        %v423 = vld [vmem:[%s309 + $0x8] sm:$0xf]
        %v424 = vld [vmem:[%s309 + $0xc] sm:$0xf]
        %v425 = vld [vmem:[%s309 + $0x10] sm:$0xf]
        %v426 = vld [vmem:[%s309 + $0x14] sm:$0xf]
        %v427 = vld [vmem:[%s309 + $0x18] sm:$0xf]
        %v428 = vld [vmem:[%s309 + $0x1c] sm:$0xf]
        %v429 = vld [vmem:[%s309 + $0x20] sm:$0xf]
        %v430 = vld [vmem:[%s309 + $0x24] sm:$0xf]
        %v431 = vld [vmem:[%s309 + $0x28] sm:$0xf]
        %v432 = vld [vmem:[%s309 + $0x2c] sm:$0xf]
        %v433 = vld [vmem:[%s309 + $0x30] sm:$0xf]
        %v434 = vld [vmem:[%s309 + $0x34] sm:$0xf]
        %v435 = vld [vmem:[%s309 + $0x38] sm:$0xf]
        %v436 = vld [vmem:[%s309 + $0x3c] sm:$0xf]
        %v453 = vunpack.c.l.b16 %v405
        %v454 = vunpack.c.l.b16 %v406
        %v455 = vunpack.c.l.b16 %v407
        %v456 = vunpack.c.l.b16 %v408
        %v457 = vunpack.c.l.b16 %v409
        %v458 = vunpack.c.l.b16 %v410
        %v459 = vunpack.c.l.b16 %v411
        %v460 = vunpack.c.l.b16 %v412
        %v461 = vunpack.c.l.b16 %v413
        %v462 = vunpack.c.l.b16 %v414
        %v463 = vunpack.c.l.b16 %v415
        %v464 = vunpack.c.l.b16 %v416
        %v465 = vunpack.c.l.b16 %v417
        %v466 = vunpack.c.l.b16 %v418
        %v467 = vunpack.c.l.b16 %v419
        %v468 = vunpack.c.l.b16 %v420
        %v469 = vpack.c.b16 %v454, %v453
        %v470 = vpack.c.b16 %v456, %v455
        %v471 = vpack.c.b16 %v458, %v457
        %v472 = vpack.c.b16 %v460, %v459
        %v473 = vpack.c.b16 %v462, %v461
        %v474 = vpack.c.b16 %v464, %v463
        %v475 = vpack.c.b16 %v466, %v465
        %v476 = vpack.c.b16 %v468, %v467
        %v501 = vunpack.c.l.b16 %v421
        %v502 = vunpack.c.l.b16 %v422
        %v503 = vunpack.c.l.b16 %v423
        %v504 = vunpack.c.l.b16 %v424
        %v505 = vunpack.c.l.b16 %v425
        %v506 = vunpack.c.l.b16 %v426
        %v507 = vunpack.c.l.b16 %v427
        %v508 = vunpack.c.l.b16 %v428
        %v509 = vunpack.c.l.b16 %v429
        %v510 = vunpack.c.l.b16 %v430
        %v511 = vunpack.c.l.b16 %v431
        %v512 = vunpack.c.l.b16 %v432
        %v513 = vunpack.c.l.b16 %v433
        %v514 = vunpack.c.l.b16 %v434
        %v515 = vunpack.c.l.b16 %v435
        %v516 = vunpack.c.l.b16 %v436
        %v517 = vpack.c.b16 %v502, %v501
        %v518 = vpack.c.b16 %v504, %v503
        %v519 = vpack.c.b16 %v506, %v505
        %v520 = vpack.c.b16 %v508, %v507
        %v521 = vpack.c.b16 %v510, %v509
        %v522 = vpack.c.b16 %v512, %v511
        %v523 = vpack.c.b16 %v514, %v513
        %v524 = vpack.c.b16 %v516, %v515
        %533 = vmatprep.subr.bf16.mxu0 0
        %534 = vmatpush1.bf16.msra.mxu0 %v517
        %535 = vmatprep.subr.bf16.mxu0 0
        %536 = vmatpush1.bf16.msra.mxu0 %v518
        %537 = vmatprep.subr.bf16.mxu0 0
        %538 = vmatpush1.bf16.msra.mxu0 %v519
        %539 = vmatprep.subr.bf16.mxu0 0
        %540 = vmatpush1.bf16.msra.mxu0 %v520
        %541 = vmatprep.subr.bf16.mxu0 0
        %542 = vmatpush1.bf16.msra.mxu0 %v521
        %543 = vmatprep.subr.bf16.mxu0 0
        %544 = vmatpush1.bf16.msra.mxu0 %v522
        %545 = vmatprep.subr.bf16.mxu0 0
        %546 = vmatpush1.bf16.msra.mxu0 %v523
        %547 = vmatprep.subr.bf16.mxu0 0
        %548 = vmatpush1.bf16.msra.mxu0 %v524
        %549 = vmatprep.subr.bf16.mxu0 0
        %550 = vmatpush1.bf16.msra.mxu0 0
        %551 = vmatprep.subr.bf16.mxu0 0
        %552 = vmatpush1.bf16.msra.mxu0 0
        %553 = vmatprep.subr.bf16.mxu0 0
        %554 = vmatpush1.bf16.msra.mxu0 0
        %555 = vmatprep.subr.bf16.mxu0 0
        %556 = vmatpush1.bf16.msra.mxu0 0
        %557 = vmatprep.subr.bf16.mxu0 0
        %558 = vmatpush1.bf16.msra.mxu0 0
        %559 = vmatprep.subr.bf16.mxu0 0
        %560 = vmatpush1.bf16.msra.mxu0 0
        %561 = vmatprep.subr.bf16.mxu0 0
        %562 = vmatpush1.bf16.msra.mxu0 0
        %563 = vmatprep.subr.bf16.mxu0 0
        %564 = vmatpush1.bf16.msra.mxu0 0
        %565 = vmatprep.mubr.bf16.mxu0 0
        %566 = vmatmul.mubr.bf16.gmra.mrb[0].mxu0 %v469
        %v567 = vpop.f32.mrb[0].mxu0
        %v568 = vadd.f32 0.0, %v567
        %v569 = vpop.f32.mrb[0].mxu0
        %v570 = vpop.f32.mrb[0].mxu0
        %v571 = vadd.f32 0.0, %v570
        %v572 = vpop.f32.mrb[0].mxu0
        %573 = vmatprep.mubr.bf16.mxu0 0
        %574 = vmatmul.mubr.bf16.gmra.mrb[0].mxu0 %v470
        %v575 = vpop.f32.mrb[0].mxu0
        %v576 = vadd.f32 0.0, %v575
        %v577 = vpop.f32.mrb[0].mxu0
        %v578 = vpop.f32.mrb[0].mxu0
        %v579 = vadd.f32 0.0, %v578
        %v580 = vpop.f32.mrb[0].mxu0
        %581 = vmatprep.mubr.bf16.mxu0 0
        %582 = vmatmul.mubr.bf16.gmra.mrb[0].mxu0 %v471
        %v583 = vpop.f32.mrb[0].mxu0
        %v584 = vadd.f32 0.0, %v583
        %v585 = vpop.f32.mrb[0].mxu0
        %v586 = vpop.f32.mrb[0].mxu0
        %v587 = vadd.f32 0.0, %v586
        %v588 = vpop.f32.mrb[0].mxu0
        %589 = vmatprep.mubr.bf16.mxu0 0
        %590 = vmatmul.mubr.bf16.gmra.mrb[0].mxu0 %v472
        %v591 = vpop.f32.mrb[0].mxu0
        %v592 = vadd.f32 0.0, %v591
        %v593 = vpop.f32.mrb[0].mxu0
        %v594 = vpop.f32.mrb[0].mxu0
        %v595 = vadd.f32 0.0, %v594
        %v596 = vpop.f32.mrb[0].mxu0
        %597 = vmatprep.mubr.bf16.mxu0 0
        %598 = vmatmul.mubr.bf16.gmra.mrb[0].mxu0 %v473
        %v599 = vpop.f32.mrb[0].mxu0
        %v600 = vadd.f32 0.0, %v599
        %v601 = vpop.f32.mrb[0].mxu0
        %v602 = vpop.f32.mrb[0].mxu0
        %v603 = vadd.f32 0.0, %v602
        %v604 = vpop.f32.mrb[0].mxu0
        %605 = vmatprep.mubr.bf16.mxu0 0
        %606 = vmatmul.mubr.bf16.gmra.mrb[0].mxu0 %v474
        %v607 = vpop.f32.mrb[0].mxu0
        %v608 = vadd.f32 0.0, %v607
        %v609 = vpop.f32.mrb[0].mxu0
        %v610 = vpop.f32.mrb[0].mxu0
        %v611 = vadd.f32 0.0, %v610
        %v612 = vpop.f32.mrb[0].mxu0
        %613 = vmatprep.mubr.bf16.mxu0 0
        %614 = vmatmul.mubr.bf16.gmra.mrb[0].mxu0 %v475
        %v615 = vpop.f32.mrb[0].mxu0
        %v616 = vadd.f32 0.0, %v615
        %v617 = vpop.f32.mrb[0].mxu0
        %v618 = vpop.f32.mrb[0].mxu0
        %v619 = vadd.f32 0.0, %v618
        %v620 = vpop.f32.mrb[0].mxu0
        %621 = vmatprep.mubr.bf16.mxu0 0
        %622 = vmatmul.mubr.bf16.gmra.mrb[0].mxu0 %v476
        %v623 = vpop.f32.mrb[0].mxu0
        %v624 = vadd.f32 0.0, %v623
        %v625 = vpop.f32.mrb[0].mxu0
        %v626 = vpop.f32.mrb[0].mxu0
        %v627 = vadd.f32 0.0, %v626
        %v628 = vpop.f32.mrb[0].mxu0
        %629 = vdwg.mxu0
        %v630 = vadd.f32 %v389, %v568
        %v631 = vadd.f32 %v390, %v571
        %v632 = vadd.f32 %v391, %v576
        %v633 = vadd.f32 %v392, %v579
        %v634 = vadd.f32 %v393, %v584
        %v635 = vadd.f32 %v394, %v587
        %v636 = vadd.f32 %v395, %v592
        %v637 = vadd.f32 %v396, %v595
        %v638 = vadd.f32 %v397, %v600
        %v639 = vadd.f32 %v398, %v603
        %v640 = vadd.f32 %v399, %v608
        %v641 = vadd.f32 %v400, %v611
        %v642 = vadd.f32 %v401, %v616
        %v643 = vadd.f32 %v402, %v619
        %v644 = vadd.f32 %v403, %v624
        %v645 = vadd.f32 %v404, %v627
        %vm646 = vcmask 523264
        %647 = vst.msk [vmem:[#allocation2] sm:$0xff] %vm646, %v630
        %648 = vst.msk [vmem:[#allocation2 + $0x8] sm:$0xff] %vm646, %v631
        %649 = vst.msk [vmem:[#allocation2 + $0x10] sm:$0xff] %vm646, %v632
        %650 = vst.msk [vmem:[#allocation2 + $0x18] sm:$0xff] %vm646, %v633
        %651 = vst.msk [vmem:[#allocation2 + $0x20] sm:$0xff] %vm646, %v634
        %652 = vst.msk [vmem:[#allocation2 + $0x28] sm:$0xff] %vm646, %v635
        %653 = vst.msk [vmem:[#allocation2 + $0x30] sm:$0xff] %vm646, %v636
        %654 = vst.msk [vmem:[#allocation2 + $0x38] sm:$0xff] %vm646, %v637
        %655 = vst.msk [vmem:[#allocation2 + $0x40] sm:$0xff] %vm646, %v638
        %656 = vst.msk [vmem:[#allocation2 + $0x48] sm:$0xff] %vm646, %v639
        %657 = vst.msk [vmem:[#allocation2 + $0x50] sm:$0xff] %vm646, %v640
        %658 = vst.msk [vmem:[#allocation2 + $0x58] sm:$0xff] %vm646, %v641
        %659 = vst.msk [vmem:[#allocation2 + $0x60] sm:$0xff] %vm646, %v642
        %660 = vst.msk [vmem:[#allocation2 + $0x68] sm:$0xff] %vm646, %v643
        %661 = vst.msk [vmem:[#allocation2 + $0x70] sm:$0xff] %vm646, %v644
        %662 = vst.msk [vmem:[#allocation2 + $0x78] sm:$0xff] %vm646, %v645
        %p663 = scmp.eq.s32.totalorder %s31, 1
        // Predicated region
        $region65: #{net_forward.2} parent=39 // pred_check
          %p664 = pneg %p663
        $region66: #{net_forward.2} parent=39 // pred_check_branch
          %666 = sbr.rel (%p664) target = $region68
        $region67: #{net_forward.2} parent=39 // pred_region
          %v667 = vld [vmem:[#allocation2] sm:$0xff]
          %v668 = vld [vmem:[#allocation2 + $0x8] sm:$0xff]
          %v669 = vld [vmem:[#allocation2 + $0x10] sm:$0xff]
          %v670 = vld [vmem:[#allocation2 + $0x18] sm:$0xff]
          %v671 = vld [vmem:[#allocation2 + $0x20] sm:$0xff]
          %v672 = vld [vmem:[#allocation2 + $0x28] sm:$0xff]
          %v673 = vld [vmem:[#allocation2 + $0x30] sm:$0xff]
          %v674 = vld [vmem:[#allocation2 + $0x38] sm:$0xff]
          %v675 = vld [vmem:[#allocation2 + $0x40] sm:$0xff]
          %v676 = vld [vmem:[#allocation2 + $0x48] sm:$0xff]
          %v677 = vld [vmem:[#allocation2 + $0x50] sm:$0xff]
          %v678 = vld [vmem:[#allocation2 + $0x58] sm:$0xff]
          %v679 = vld [vmem:[#allocation2 + $0x60] sm:$0xff]
          %v680 = vld [vmem:[#allocation2 + $0x68] sm:$0xff]
          %v681 = vld [vmem:[#allocation2 + $0x70] sm:$0xff]
          %v682 = vld [vmem:[#allocation2 + $0x78] sm:$0xff]
          %v683 = vld [vmem:[#allocation8] sm:$0x1]
          %v685 = vlaneseq
          %v686 = vshrl.u32 %v685, 7
          %v687 = vsub.s32 0, %v686
          %v688 = vrot.slane %v683, %v687
          %v690 = vadd.f32 %v667, %v688
          %v691 = vadd.f32 %v668, %v688
          %v692 = vadd.f32 %v669, %v688
          %v693 = vadd.f32 %v670, %v688
          %v694 = vadd.f32 %v671, %v688
          %v695 = vadd.f32 %v672, %v688
          %v696 = vadd.f32 %v673, %v688
          %v697 = vadd.f32 %v674, %v688
          %v698 = vadd.f32 %v675, %v688
          %v699 = vadd.f32 %v676, %v688
          %v700 = vadd.f32 %v677, %v688
          %v701 = vadd.f32 %v678, %v688
          %v702 = vadd.f32 %v679, %v688
          %v703 = vadd.f32 %v680, %v688
          %v704 = vadd.f32 %v681, %v688
          %v705 = vadd.f32 %v682, %v688
          %v706 = vmax.f32 %v690, 0.0
          %v707 = vmax.f32 %v691, 0.0
          %v708 = vmax.f32 %v692, 0.0
          %v709 = vmax.f32 %v693, 0.0
          %v710 = vmax.f32 %v694, 0.0
          %v711 = vmax.f32 %v695, 0.0
          %v712 = vmax.f32 %v696, 0.0
          %v713 = vmax.f32 %v697, 0.0
          %v714 = vmax.f32 %v698, 0.0
          %v715 = vmax.f32 %v699, 0.0
          %v716 = vmax.f32 %v700, 0.0
          %v717 = vmax.f32 %v701, 0.0
          %v718 = vmax.f32 %v702, 0.0
          %v719 = vmax.f32 %v703, 0.0
          %v720 = vmax.f32 %v704, 0.0
          %v721 = vmax.f32 %v705, 0.0
          %v722 = vld [vmem:[%s326] sm:$0xf]
          %v723 = vld [vmem:[%s326 + $0x4] sm:$0xf]
          %v724 = vld [vmem:[%s326 + $0x8] sm:$0xf]
          %v725 = vld [vmem:[%s326 + $0xc] sm:$0xf]
          %v726 = vld [vmem:[%s326 + $0x10] sm:$0xf]
          %v727 = vld [vmem:[%s326 + $0x14] sm:$0xf]
          %v728 = vld [vmem:[%s326 + $0x18] sm:$0xf]
          %v729 = vld [vmem:[%s326 + $0x1c] sm:$0xf]
          %v730 = vld [vmem:[%s326 + $0x20] sm:$0xf]
          %v731 = vld [vmem:[%s326 + $0x24] sm:$0xf]
          %v732 = vld [vmem:[%s326 + $0x28] sm:$0xf]
          %v733 = vld [vmem:[%s326 + $0x2c] sm:$0xf]
          %v734 = vld [vmem:[%s326 + $0x30] sm:$0xf]
          %v735 = vld [vmem:[%s326 + $0x34] sm:$0xf]
          %v736 = vld [vmem:[%s326 + $0x38] sm:$0xf]
          %v737 = vld [vmem:[%s326 + $0x3c] sm:$0xf]
          %v738 = vunpack.c.l.bf16 %v722
          %v739 = vunpack.c.l.bf16 %v723
          %v740 = vunpack.c.l.bf16 %v724
          %v741 = vunpack.c.l.bf16 %v725
          %v742 = vunpack.c.l.bf16 %v726
          %v743 = vunpack.c.l.bf16 %v727
          %v744 = vunpack.c.l.bf16 %v728
          %v745 = vunpack.c.l.bf16 %v729
          %v746 = vunpack.c.l.bf16 %v730
          %v747 = vunpack.c.l.bf16 %v731
          %v748 = vunpack.c.l.bf16 %v732
          %v749 = vunpack.c.l.bf16 %v733
          %v750 = vunpack.c.l.bf16 %v734
          %v751 = vunpack.c.l.bf16 %v735
          %v752 = vunpack.c.l.bf16 %v736
          %v753 = vunpack.c.l.bf16 %v737
          %v754 = vmul.f32 %v706, %v738
          %v755 = vmul.f32 %v707, %v739
          %v756 = vmul.f32 %v708, %v740
          %v757 = vmul.f32 %v709, %v741
          %v758 = vmul.f32 %v710, %v742
          %v759 = vmul.f32 %v711, %v743
          %v760 = vmul.f32 %v712, %v744
          %v761 = vmul.f32 %v713, %v745
          %v762 = vmul.f32 %v714, %v746
          %v763 = vmul.f32 %v715, %v747
          %v764 = vmul.f32 %v716, %v748
          %v765 = vmul.f32 %v717, %v749
          %v766 = vmul.f32 %v718, %v750
          %v767 = vmul.f32 %v719, %v751
          %v768 = vmul.f32 %v720, %v752
          %v769 = vmul.f32 %v721, %v753
          %v770 = vpack.c.bf16 %v755, %v754
          %v771 = vpack.c.bf16 %v757, %v756
          %v772 = vpack.c.bf16 %v759, %v758
          %v773 = vpack.c.bf16 %v761, %v760
          %v774 = vpack.c.bf16 %v763, %v762
          %v775 = vpack.c.bf16 %v765, %v764
          %v776 = vpack.c.bf16 %v767, %v766
          %v777 = vpack.c.bf16 %v769, %v768
          %v778 = vld [vmem:[#allocation9] sm:$0xf]
          %v779 = vld [vmem:[#allocation9 + $0x4] sm:$0xf]
          %v780 = vld [vmem:[#allocation9 + $0x8] sm:$0xf]
          %v781 = vld [vmem:[#allocation9 + $0xc] sm:$0xf]
          %v782 = vld [vmem:[#allocation9 + $0x10] sm:$0xf]
          %v783 = vld [vmem:[#allocation9 + $0x14] sm:$0xf]
          %v784 = vld [vmem:[#allocation9 + $0x18] sm:$0xf]
          %v785 = vld [vmem:[#allocation9 + $0x1c] sm:$0xf]
          %v794 = vunpack.c.l.b16 %v778
          %v795 = vunpack.c.l.b16 %v779
          %v796 = vunpack.c.l.b16 %v780
          %v797 = vunpack.c.l.b16 %v781
          %v798 = vunpack.c.l.b16 %v782
          %v799 = vunpack.c.l.b16 %v783
          %v800 = vunpack.c.l.b16 %v784
          %v801 = vunpack.c.l.b16 %v785
          %v802 = vpack.c.b16 %v795, %v794
          %v803 = vpack.c.b16 %v797, %v796
          %v804 = vpack.c.b16 %v799, %v798
          %v805 = vpack.c.b16 %v801, %v800
          %v811 = vsel %vm646, %v770, 0
          %v814 = vsel %vm646, %v771, 0
          %v817 = vsel %vm646, %v772, 0
          %v820 = vsel %vm646, %v773, 0
          %v823 = vsel %vm646, %v774, 0
          %v826 = vsel %vm646, %v775, 0
          %v829 = vsel %vm646, %v776, 0
          %v832 = vsel %vm646, %v777, 0
          %834 = vmatprep.subr.bf16.mxu0 0
          %835 = vmatpush1.bf16.msra.mxu0 %v802
          %836 = vmatprep.subr.bf16.mxu0 0
          %837 = vmatpush1.bf16.msra.mxu0 %v803
          %838 = vmatprep.subr.bf16.mxu0 0
          %839 = vmatpush1.bf16.msra.mxu0 %v804
          %840 = vmatprep.subr.bf16.mxu0 0
          %841 = vmatpush1.bf16.msra.mxu0 %v805
          %842 = vmatprep.subr.bf16.mxu0 0
          %843 = vmatpush1.bf16.msra.mxu0 0
          %844 = vmatprep.subr.bf16.mxu0 0
          %845 = vmatpush1.bf16.msra.mxu0 0
          %846 = vmatprep.subr.bf16.mxu0 0
          %847 = vmatpush1.bf16.msra.mxu0 0
          %848 = vmatprep.subr.bf16.mxu0 0
          %849 = vmatpush1.bf16.msra.mxu0 0
          %850 = vmatprep.subr.bf16.mxu0 0
          %851 = vmatpush1.bf16.msra.mxu0 0
          %852 = vmatprep.subr.bf16.mxu0 0
          %853 = vmatpush1.bf16.msra.mxu0 0
          %854 = vmatprep.subr.bf16.mxu0 0
          %855 = vmatpush1.bf16.msra.mxu0 0
          %856 = vmatprep.subr.bf16.mxu0 0
          %857 = vmatpush1.bf16.msra.mxu0 0
          %858 = vmatprep.subr.bf16.mxu0 0
          %859 = vmatpush1.bf16.msra.mxu0 0
          %860 = vmatprep.subr.bf16.mxu0 0
          %861 = vmatpush1.bf16.msra.mxu0 0
          %862 = vmatprep.subr.bf16.mxu0 0
          %863 = vmatpush1.bf16.msra.mxu0 0
          %864 = vmatprep.subr.bf16.mxu0 0
          %865 = vmatpush1.bf16.msra.mxu0 0
          %866 = vmatprep.mubr.bf16.mxu0 0
          %867 = vmatmul.mubr.bf16.gmra.mrb[0].mxu0 %v811
          %v868 = vpop.f32.mrb[0].mxu0
          %v869 = vadd.f32 0.0, %v868
          %v870 = vpop.f32.mrb[0].mxu0
          %v871 = vpop.f32.mrb[0].mxu0
          %v872 = vadd.f32 0.0, %v871
          %v873 = vpop.f32.mrb[0].mxu0
          %874 = vmatprep.mubr.bf16.mxu0 0
          %875 = vmatmul.mubr.bf16.gmra.mrb[0].mxu0 %v814
          %v876 = vpop.f32.mrb[0].mxu0
          %v877 = vadd.f32 0.0, %v876
          %v878 = vpop.f32.mrb[0].mxu0
          %v879 = vpop.f32.mrb[0].mxu0
          %v880 = vadd.f32 0.0, %v879
          %v881 = vpop.f32.mrb[0].mxu0
          %882 = vmatprep.mubr.bf16.mxu0 0
          %883 = vmatmul.mubr.bf16.gmra.mrb[0].mxu0 %v817
          %v884 = vpop.f32.mrb[0].mxu0
          %v885 = vadd.f32 0.0, %v884
          %v886 = vpop.f32.mrb[0].mxu0
          %v887 = vpop.f32.mrb[0].mxu0
          %v888 = vadd.f32 0.0, %v887
          %v889 = vpop.f32.mrb[0].mxu0
          %890 = vmatprep.mubr.bf16.mxu0 0
          %891 = vmatmul.mubr.bf16.gmra.mrb[0].mxu0 %v820
          %v892 = vpop.f32.mrb[0].mxu0
          %v893 = vadd.f32 0.0, %v892
          %v894 = vpop.f32.mrb[0].mxu0
          %v895 = vpop.f32.mrb[0].mxu0
          %v896 = vadd.f32 0.0, %v895
          %v897 = vpop.f32.mrb[0].mxu0
          %898 = vmatprep.mubr.bf16.mxu0 0
          %899 = vmatmul.mubr.bf16.gmra.mrb[0].mxu0 %v823
          %v900 = vpop.f32.mrb[0].mxu0
          %v901 = vadd.f32 0.0, %v900
          %v902 = vpop.f32.mrb[0].mxu0
          %v903 = vpop.f32.mrb[0].mxu0
          %v904 = vadd.f32 0.0, %v903
          %v905 = vpop.f32.mrb[0].mxu0
          %906 = vmatprep.mubr.bf16.mxu0 0
          %907 = vmatmul.mubr.bf16.gmra.mrb[0].mxu0 %v826
          %v908 = vpop.f32.mrb[0].mxu0
          %v909 = vadd.f32 0.0, %v908
          %v910 = vpop.f32.mrb[0].mxu0
          %v911 = vpop.f32.mrb[0].mxu0
          %v912 = vadd.f32 0.0, %v911
          %v913 = vpop.f32.mrb[0].mxu0
          %914 = vmatprep.mubr.bf16.mxu0 0
          %915 = vmatmul.mubr.bf16.gmra.mrb[0].mxu0 %v829
          %v916 = vpop.f32.mrb[0].mxu0
          %v917 = vadd.f32 0.0, %v916
          %v918 = vpop.f32.mrb[0].mxu0
          %v919 = vpop.f32.mrb[0].mxu0
          %v920 = vadd.f32 0.0, %v919
          %v921 = vpop.f32.mrb[0].mxu0
          %922 = vmatprep.mubr.bf16.mxu0 0
          %923 = vmatmul.mubr.bf16.gmra.mrb[0].mxu0 %v832
          %v924 = vpop.f32.mrb[0].mxu0
          %v925 = vadd.f32 0.0, %v924
          %v926 = vpop.f32.mrb[0].mxu0
          %v927 = vpop.f32.mrb[0].mxu0
          %v928 = vadd.f32 0.0, %v927
          %v929 = vpop.f32.mrb[0].mxu0
          %930 = vdwg.mxu0
          %v931 = vpack.c.bf16 %v872, %v869
          %v932 = vpack.c.bf16 %v880, %v877
          %v933 = vpack.c.bf16 %v888, %v885
          %v934 = vpack.c.bf16 %v896, %v893
          %v935 = vpack.c.bf16 %v904, %v901
          %v936 = vpack.c.bf16 %v912, %v909
          %v937 = vpack.c.bf16 %v920, %v917
          %v938 = vpack.c.bf16 %v928, %v925
          %v947 = vunpack.c.l.b16 %v931
          %v948 = vunpack.c.h.b16 %v931
          %v949 = vunpack.c.l.b16 %v932
          %v950 = vunpack.c.h.b16 %v932
          %v951 = vunpack.c.l.b16 %v933
          %v952 = vunpack.c.h.b16 %v933
          %v953 = vunpack.c.l.b16 %v934
          %v954 = vunpack.c.h.b16 %v934
          %v955 = vunpack.c.l.b16 %v935
          %v956 = vunpack.c.h.b16 %v935
          %v957 = vunpack.c.l.b16 %v936
          %v958 = vunpack.c.h.b16 %v936
          %v959 = vunpack.c.l.b16 %v937
          %v960 = vunpack.c.h.b16 %v937
          %v961 = vunpack.c.l.b16 %v938
          %v962 = vunpack.c.h.b16 %v938
          %v963 = vpack.c.b16 %v947, %v947
          %v964 = vpack.c.b16 %v948, %v948
          %v965 = vpack.c.b16 %v949, %v949
          %v966 = vpack.c.b16 %v950, %v950
          %v967 = vpack.c.b16 %v951, %v951
          %v968 = vpack.c.b16 %v952, %v952
          %v969 = vpack.c.b16 %v953, %v953
          %v970 = vpack.c.b16 %v954, %v954
          %v971 = vpack.c.b16 %v955, %v955
          %v972 = vpack.c.b16 %v956, %v956
          %v973 = vpack.c.b16 %v957, %v957
          %v974 = vpack.c.b16 %v958, %v958
          %v975 = vpack.c.b16 %v959, %v959
          %v976 = vpack.c.b16 %v960, %v960
          %v977 = vpack.c.b16 %v961, %v961
          %v978 = vpack.c.b16 %v962, %v962
          %vm995 = vcmask 60416
          %996 = vst.msk [vmem:[%s362] sm:$0xf] %vm995, %v963
          %997 = vst.msk [vmem:[%s362 + $0x4] sm:$0xf] %vm995, %v964
          %998 = vst.msk [vmem:[%s362 + $0x8] sm:$0xf] %vm995, %v965
          %999 = vst.msk [vmem:[%s362 + $0xc] sm:$0xf] %vm995, %v966
          %1000 = vst.msk [vmem:[%s362 + $0x10] sm:$0xf] %vm995, %v967
          %1001 = vst.msk [vmem:[%s362 + $0x14] sm:$0xf] %vm995, %v968
          %1002 = vst.msk [vmem:[%s362 + $0x18] sm:$0xf] %vm995, %v969
          %1003 = vst.msk [vmem:[%s362 + $0x1c] sm:$0xf] %vm995, %v970
          %1004 = vst.msk [vmem:[%s362 + $0x20] sm:$0xf] %vm995, %v971
          %1005 = vst.msk [vmem:[%s362 + $0x24] sm:$0xf] %vm995, %v972
          %1006 = vst.msk [vmem:[%s362 + $0x28] sm:$0xf] %vm995, %v973
          %1007 = vst.msk [vmem:[%s362 + $0x2c] sm:$0xf] %vm995, %v974
          %1008 = vst.msk [vmem:[%s362 + $0x30] sm:$0xf] %vm995, %v975
          %1009 = vst.msk [vmem:[%s362 + $0x34] sm:$0xf] %vm995, %v976
          %1010 = vst.msk [vmem:[%s362 + $0x38] sm:$0xf] %vm995, %v977
          %1011 = vst.msk [vmem:[%s362 + $0x3c] sm:$0xf] %vm995, %v978
        $region68: #{net_forward.2} parent=39 // pred_fallthru
          _
        %s1012 = sand.u32 %s168, 1
        %s1013 = scalar_lea.sflag [#allocation5], %s1012
        %s1014 = sand.u32 %s168, 1
        %s1015 = smul.addr %s1014, 64
        %s1016 = scalar_lea.vmem [#allocation12], %s1015
        // Predicated region
        $region69: #{net_forward.2} parent=39 // pred_check
          %p1017 = pneg %p178
        $region70: #{net_forward.2} parent=39 // pred_check_branch
          %1019 = sbr.rel (%p1017) target = $region72
        $region71: #{net_forward.2} parent=39 // pred_region
          %s1020 = smul.u32 16, %s30
          %s1022 = ssub.s32 1024, 1024
          %1023 = vsyncadd %s1013, %s1022
          %s1024 = smul.addr %s1020, 64
          %s1025 = scalar_lea.hbm %s5, %s1024
          %s1026 = sshll.u32 %s1016, 4
          %s1027 = int_to_ptr.vmem [resolvable:$true] %s1026
          %1032 = dma.vmem_to_hbm [thread:$0]  %s1027, 1024, %s1025, %s1013, 64, 64, 4
        $region72: #{net_forward.2} parent=39 // pred_fallthru
          _
      $region40: #{net_forward.2} parent=5 // pred_fallthru
        _
      %p1033 = scmp.le.s32.totalorder 2, %s21
      // Predicated region
      $region73: #{net_forward.2} parent=5 // pred_check
        %p1034 = pneg %p1033
      $region74: #{net_forward.2} parent=5 // pred_check_branch
        %1036 = sbr.rel (%p1034) target = $region76
      $region75: #{net_forward.2} parent=5 // pred_region
        %s1037 = ssub.s32 %s21, 2
        // Predicated region
        $region77: #{net_forward.2} parent=75 // pred_check
          %p1038 = pneg %p184
        $region78: #{net_forward.2} parent=75 // pred_check_branch
          %1040 = sbr.rel (%p1038) target = $region80
        $region79: #{net_forward.2} parent=75 // pred_region
          %s1041 = sand.u32 %s169, 1
          %s1042 = scalar_lea.sflag [#allocation5], %s1041
          %s1043 = sand.u32 %s169, 1
          %s1044 = smul.addr %s1043, 64
          %s1045 = scalar_lea.vmem [#allocation12], %s1044
          %1046 = dma.done %s1042, 1024
        $region80: #{net_forward.2} parent=75 // pred_fallthru
          _
      $region76: #{net_forward.2} parent=5 // pred_fallthru
        _
    $region6: #{net_forward.2} parent=1 // loop_footer
      %s25 = sadd.s32 1, %s21
    $region7: #{net_forward.2} parent=1 // loop_footer_branch
      %20 = sbr.rel target = $region3
    $region8: #{net_forward.2} parent=1 // loop_exit
      _
    %1047 = vsyncpa [#allocation4], 1
    %s1048 = scalar_lea.sflag [#allocation4], 1
    %1049 = vsyncpa %s1048, 1
    %1050 = vsyncpa [#allocation7], 1
    %s1051 = scalar_lea.sflag [#allocation7], 1
    %1052 = vsyncpa %s1051, 1
    %1053 = vsyncpa [#allocation10], 1
    %1054 = vsyncpa [#allocation5], 1
    %s1055 = scalar_lea.sflag [#allocation5], 1
    %1056 = vsyncpa %s1055, 1

// kernel: net_forward.3
$region0: #{net_forward.3}
  #allocation0 [shape = 'u32[]', space=smem, size = 0x4, offset = 0x4, fixed_abs, tag = 'smem constant byte address 0x4 - core index']
  #allocation1 [shape = 'u32[144,128]{1,0:T(1,128)}', space=vmem, size = 0x12000, scoped, tag = 'internal scratch']
  #allocation2 [shape = 'f32[128,8]{1,0:T(8,128)}', space=vmem, size = 0x10000, scoped, tag = 'scratch operand']
  %s0 = inlined_call_operand.hbm [shape: bf16[256,256], index: 0, kind: input, shape index: {}]
  %s1 = inlined_call_operand.hbm [shape: bf16[256,8], index: 1, kind: input, shape index: {}]
  %s2 = inlined_call_operand.hbm [shape: f32[1,8], index: 2, kind: input, shape index: {}]
  %s3 = inlined_call_operand.hbm [shape: f32[256,8], index: 3, kind: output, shape index: {0}]
  %s4 = inlined_call_operand.hbm [shape: f32[256,8], index: 4, kind: output, shape index: {1}]
  %5 = xla_tuple %s3, %s4
  %s6 = sld [smem:[#allocation0]]
  $region73: #{net_forward.3} parent=0
    _
  %s8 = ssub.s32 1, %s6
  %s9 = scalar_select 0, %s8, %s6
  $region1: #{net_forward.3} parent=0
    #allocation3 [shape = 'u8[65536]{0}', space=vmem, size = 0x10000, scoped, tag = 'input window, operand 0']
    #allocation4 [shape = 's32[2]{0}', space=sflag, size = 0x8, scoped, tag = 'scoped memory for net_forward.3']
    #allocation5 [shape = 's32[2]{0}', space=sflag, size = 0x8, scoped, tag = 'scoped memory for net_forward.3']
    #allocation6 [shape = 'u8[65536]{0}', space=vmem, size = 0x10000, scoped, tag = 'input window, operand 1']
    #allocation7 [shape = 's32[2]{0}', space=sflag, size = 0x8, scoped, tag = 'scoped memory for net_forward.3']
    #allocation8 [shape = 'u8[512]{0}', space=vmem, size = 0x400, scoped, tag = 'input window, operand 2, single buffered']
    #allocation9 [shape = 'u8[131072]{0}', space=vmem, size = 0x20000, scoped, tag = 'output window, operand 0']
    #allocation10 [shape = 'u8[131072]{0}', space=vmem, size = 0x20000, scoped, tag = 'output window, operand 1']
    #allocation11 [shape = 's32[2]{0}', space=sflag, size = 0x8, scoped, tag = 'scoped memory for net_forward.3']
    %10 = vsyncpa [#allocation4], 0
    %s11 = scalar_lea.sflag [#allocation4], 1
    %12 = vsyncpa %s11, 0
    %13 = vsyncpa [#allocation7], 0
    %s14 = scalar_lea.sflag [#allocation7], 1
    %15 = vsyncpa %s14, 0
    %16 = vsyncpa [#allocation5], 0
    %s17 = scalar_lea.sflag [#allocation5], 1
    %18 = vsyncpa %s17, 0
    %19 = vsyncpa [#allocation11], 0
    %s20 = scalar_lea.sflag [#allocation11], 1
    %21 = vsyncpa %s20, 0
    loop: start=0, step=1, limit=6
    $region2: #{net_forward.3} parent=1 // loop_pre_header
      _
    $region3: #{net_forward.3} parent=1 // loop_header
      %s23 = sphi 0, %s27
      %p24 = scmp.ge.s32.totalorder %s23, 6
      %s30 = sphi 0, %s42
      %s31 = sphi 0, %s38
      %s32 = sphi 0, %s30
      %s33 = sphi 0, %s31
      %s34 = sphi 0, %s32
      %s35 = sphi 0, %s33
      %s47 = sphi 0, %s49
      %s50 = sphi 0, %s47
      %s51 = sphi 0, %s50
      %s67 = sphi 0, %s51
      %s73 = sphi 0, %s75
      %s76 = sphi 0, %s73
      %s77 = sphi 0, %s76
      %s93 = sphi 0, %s77
      %s97 = sphi 0, %s97
      %s99 = sphi 0, %s97
      %s100 = sphi 0, %s99
      %s114 = sphi 0, %s100
      %s120 = sphi 0, %s122
      %s123 = sphi 0, %s120
      %s124 = sphi 0, %s123
      %s140 = sphi 0, %s124
      %s146 = sphi 0, %s148
      %s149 = sphi 0, %s146
      %s150 = sphi 0, %s149
      %s166 = sphi 0, %s150
    $region4: #{net_forward.3} parent=1 // loop_header_branch
      %26 = sbr.rel (%p24) target = $region8
    $region5: #{net_forward.3} parent=1 // loop_body
      %s28 = ssub.s32 %s23, 1
      %s29 = ssub.s32 %s23, 2
      %s36 = sadd.s32 1, %s31
      %p37 = scmp.ge.s32.totalorder %s36, 2
      %s38 = scalar_select %p37, 0, %s36
      %s39 = sadd.s32 1, %s30
      %s40 = scalar_select %p37, %s39, %s30
      %p41 = scmp.ge.s32.totalorder %s40, 2
      %s42 = scalar_select %p41, 0, %s40
      %s43 = ssub.s32 %s30, %s42
      %s44 = ssub.s32 %s31, %s38
      %s45 = sor.u32 %s43, %s44
      %p46 = scmp.eq.s32.totalorder %s45, 0
      %s48 = sadd.s32 %s47, 1
      %s49 = scalar_select %p46, %s47, %s48
      %p52 = pneg %p46
      %p53 = scmp.eq.s32.totalorder %s23, 3
      %p54 = por %p52, %p53
      %p55 = scmp.ne.s32.totalorder %s47, %s50
      %p56 = scmp.eq.s32.totalorder %s23, 0
      %p57 = por %p55, %p56
      %p58 = scmp.ne.s32.totalorder %s47, %s50
      %p59 = scmp.eq.s32.totalorder %s28, 3
      %p60 = por %p58, %p59
      %p61 = scmp.ne.s32.totalorder %s50, %s51
      %p62 = scmp.eq.s32.totalorder %s28, 0
      %p63 = por %p61, %p62
      %p64 = scmp.ne.s32.totalorder %s50, %s51
      %p65 = scmp.eq.s32.totalorder %s29, 3
      %p66 = por %p64, %p65
      %p68 = scmp.ne.s32.totalorder %s51, %s67
      %p69 = scmp.eq.s32.totalorder %s29, 0
      %p70 = por %p68, %p69
      %s71 = ssub.s32 %s31, %s38
      %p72 = scmp.eq.s32.totalorder %s71, 0
      %s74 = sadd.s32 %s73, 1
      %s75 = scalar_select %p72, %s73, %s74
      %p78 = pneg %p72
      %p79 = scmp.eq.s32.totalorder %s23, 3
      %p80 = por %p78, %p79
      %p81 = scmp.ne.s32.totalorder %s73, %s76
      %p82 = scmp.eq.s32.totalorder %s23, 0
      %p83 = por %p81, %p82
      %p84 = scmp.ne.s32.totalorder %s73, %s76
      %p85 = scmp.eq.s32.totalorder %s28, 3
      %p86 = por %p84, %p85
      %p87 = scmp.ne.s32.totalorder %s76, %s77
      %p88 = scmp.eq.s32.totalorder %s28, 0
      %p89 = por %p87, %p88
      %p90 = scmp.ne.s32.totalorder %s76, %s77
      %p91 = scmp.eq.s32.totalorder %s29, 3
      %p92 = por %p90, %p91
      %p94 = scmp.ne.s32.totalorder %s77, %s93
      %p95 = scmp.eq.s32.totalorder %s29, 0
      %p96 = por %p94, %p95
      %s98 = sadd.s32 %s97, 1
      %p101 = scmp.eq.s32.totalorder %s23, 3
      %p102 = scmp.ne.s32.totalorder %s97, %s99
      %p103 = scmp.eq.s32.totalorder %s23, 0
      %p104 = por %p102, %p103
      %p105 = scmp.ne.s32.totalorder %s97, %s99
      %p106 = scmp.eq.s32.totalorder %s28, 3
      %p107 = por %p105, %p106
      %p108 = scmp.ne.s32.totalorder %s99, %s100
      %p109 = scmp.eq.s32.totalorder %s28, 0
      %p110 = por %p108, %p109
      %p111 = scmp.ne.s32.totalorder %s99, %s100
      %p112 = scmp.eq.s32.totalorder %s29, 3
      %p113 = por %p111, %p112
      %p115 = scmp.ne.s32.totalorder %s100, %s114
      %p116 = scmp.eq.s32.totalorder %s29, 0
      %p117 = por %p115, %p116
      %s118 = ssub.s32 %s30, %s42
      %p119 = scmp.eq.s32.totalorder %s118, 0
      %s121 = sadd.s32 %s120, 1
      %s122 = scalar_select %p119, %s120, %s121
      %p125 = pneg %p119
      %p126 = scmp.eq.s32.totalorder %s23, 3
      %p127 = por %p125, %p126
      %p128 = scmp.ne.s32.totalorder %s120, %s123
      %p129 = scmp.eq.s32.totalorder %s23, 0
      %p130 = por %p128, %p129
      %p131 = scmp.ne.s32.totalorder %s120, %s123
      %p132 = scmp.eq.s32.totalorder %s28, 3
      %p133 = por %p131, %p132
      %p134 = scmp.ne.s32.totalorder %s123, %s124
      %p135 = scmp.eq.s32.totalorder %s28, 0
      %p136 = por %p134, %p135
      %p137 = scmp.ne.s32.totalorder %s123, %s124
      %p138 = scmp.eq.s32.totalorder %s29, 3
      %p139 = por %p137, %p138
      %p141 = scmp.ne.s32.totalorder %s124, %s140
      %p142 = scmp.eq.s32.totalorder %s29, 0
      %p143 = por %p141, %p142
      %s144 = ssub.s32 %s30, %s42
      %p145 = scmp.eq.s32.totalorder %s144, 0
      %s147 = sadd.s32 %s146, 1
      %s148 = scalar_select %p145, %s146, %s147
      %p151 = pneg %p145
      %p152 = scmp.eq.s32.totalorder %s23, 3
      %p153 = por %p151, %p152
      %p154 = scmp.ne.s32.totalorder %s146, %s149
      %p155 = scmp.eq.s32.totalorder %s23, 0
      %p156 = por %p154, %p155
      %p157 = scmp.ne.s32.totalorder %s146, %s149
      %p158 = scmp.eq.s32.totalorder %s28, 3
      %p159 = por %p157, %p158
      %p160 = scmp.ne.s32.totalorder %s149, %s150
      %p161 = scmp.eq.s32.totalorder %s28, 0
      %p162 = por %p160, %p161
      %p163 = scmp.ne.s32.totalorder %s149, %s150
      %p164 = scmp.eq.s32.totalorder %s29, 3
      %p165 = por %p163, %p164
      %p167 = scmp.ne.s32.totalorder %s150, %s166
      %p168 = scmp.eq.s32.totalorder %s29, 0
      %p169 = por %p167, %p168
      %p170 = scmp.le.s32.totalorder 1, %s23
      %p171 = scmp.lt.s32.totalorder %s23, 5
      %p172 = pnand %p170, %p171
      %p173 = pneg %p172
      // Predicated region
      $region9: #{net_forward.3} parent=5 // pred_check
        _
      $region10: #{net_forward.3} parent=5 // pred_check_branch
        %175 = sbr.rel (%p172) target = $region12
      $region11: #{net_forward.3} parent=5 // pred_region
        %s176 = ssub.s32 %s23, 1
        // Predicated region
        $region13: #{net_forward.3} parent=11 // pred_check
          %p177 = pneg %p110
        $region14: #{net_forward.3} parent=11 // pred_check_branch
          %179 = sbr.rel (%p177) target = $region16
        $region15: #{net_forward.3} parent=11 // pred_region
          %s181 = ssub.s32 16, 16
          %182 = vsyncadd [#allocation7], %s181
          %s184 = sshll.u32 [#allocation8], 4
          %s185 = int_to_ptr.vmem [resolvable:$true] %s184
          %187 = dma.hbm_to_vmem [thread:$0]  %s2, 16, %s185, [#allocation7]
        $region16: #{net_forward.3} parent=11 // pred_fallthru
          _
      $region12: #{net_forward.3} parent=5 // pred_fallthru
        _
      %p188 = scmp.lt.s32.totalorder %s23, 4
      // Predicated region
      $region17: #{net_forward.3} parent=5 // pred_check
        %p189 = pneg %p188
      $region18: #{net_forward.3} parent=5 // pred_check_branch
        %191 = sbr.rel (%p189) target = $region20
      $region19: #{net_forward.3} parent=5 // pred_region
        // Predicated region
        $region21: #{net_forward.3} parent=19 // pred_check
          %p192 = pneg %p57
        $region22: #{net_forward.3} parent=19 // pred_check_branch
          %194 = sbr.rel (%p192) target = $region24
        $region23: #{net_forward.3} parent=19 // pred_region
          %s195 = sand.u32 %s47, 1
          %s196 = scalar_lea.sflag [#allocation4], %s195
          %s197 = sand.u32 %s47, 1
          %s198 = smul.addr %s197, 64
          %s199 = scalar_lea.vmem [#allocation3], %s198
          %s200 = smul.u32 16, %s30
          %s202 = ssub.s32 1024, 1024
          %203 = vsyncadd %s196, %s202
          %s204 = smul.addr %s200, 2
          %s205 = sadd.s32 %s31, %s204
          %s206 = smul.addr %s205, 64
          %s207 = scalar_lea.hbm %s0, %s206
          %s208 = sshll.u32 %s199, 4
          %s209 = int_to_ptr.vmem [resolvable:$true] %s208
          %214 = dma.hbm_to_vmem [thread:$0]  %s207, 1024, %s209, %s196, 128, 64, 4
        $region24: #{net_forward.3} parent=19 // pred_fallthru
          _
        // Predicated region
        $region25: #{net_forward.3} parent=19 // pred_check
          %p215 = pneg %p83
        $region26: #{net_forward.3} parent=19 // pred_check_branch
          %217 = sbr.rel (%p215) target = $region28
        $region27: #{net_forward.3} parent=19 // pred_region
          %s218 = sand.u32 %s23, 1
          %s219 = scalar_lea.sflag [#allocation7], %s218
          %s220 = sand.u32 %s73, 1
          %s221 = smul.addr %s220, 64
          %s222 = scalar_lea.vmem [#allocation6], %s221
          %s223 = smul.u32 16, %s31
          %s225 = ssub.s32 1024, 1024
          %226 = vsyncadd %s219, %s225
          %s227 = smul.addr %s223, 64
          %s228 = scalar_lea.hbm %s1, %s227
          %s229 = sshll.u32 %s222, 4
          %s230 = int_to_ptr.vmem [resolvable:$true] %s229
          %235 = dma.hbm_to_vmem [thread:$0]  %s228, 1024, %s230, %s219, 64, 64, 4
        $region28: #{net_forward.3} parent=19 // pred_fallthru
          _
      $region20: #{net_forward.3} parent=5 // pred_fallthru
        _
      %p236 = scmp.le.s32.totalorder 1, %s23
      %p237 = scmp.lt.s32.totalorder %s23, 5
      %p238 = pnand %p236, %p237
      %p239 = pneg %p238
      // Predicated region
      $region29: #{net_forward.3} parent=5 // pred_check
        _
      $region30: #{net_forward.3} parent=5 // pred_check_branch
        %241 = sbr.rel (%p238) target = $region32
      $region31: #{net_forward.3} parent=5 // pred_region
        %s242 = ssub.s32 %s23, 1
        %s243 = sand.u32 %s50, 1
        %s244 = scalar_lea.sflag [#allocation4], %s243
        %s245 = sand.u32 %s50, 1
        %s246 = smul.addr %s245, 64
        %s247 = scalar_lea.vmem [#allocation3], %s246
        // Predicated region
        $region33: #{net_forward.3} parent=31 // pred_check
          %p248 = pneg %p63
        $region34: #{net_forward.3} parent=31 // pred_check_branch
          %250 = sbr.rel (%p248) target = $region36
        $region35: #{net_forward.3} parent=31 // pred_region
          %251 = dma.done %s244, 1024
        $region36: #{net_forward.3} parent=31 // pred_fallthru
          _
        %s252 = sand.u32 %s28, 1
        %s253 = scalar_lea.sflag [#allocation7], %s252
        %s254 = sand.u32 %s76, 1
        %s255 = smul.addr %s254, 64
        %s256 = scalar_lea.vmem [#allocation6], %s255
        // Predicated region
        $region37: #{net_forward.3} parent=31 // pred_check
          %p257 = pneg %p89
        $region38: #{net_forward.3} parent=31 // pred_check_branch
          %259 = sbr.rel (%p257) target = $region40
        $region39: #{net_forward.3} parent=31 // pred_region
          %260 = dma.done %s253, 1024
        $region40: #{net_forward.3} parent=31 // pred_fallthru
          _
        // Predicated region
        $region41: #{net_forward.3} parent=31 // pred_check
          %p261 = pneg %p110
        $region42: #{net_forward.3} parent=31 // pred_check_branch
          %263 = sbr.rel (%p261) target = $region44
        $region43: #{net_forward.3} parent=31 // pred_region
          %264 = dma.done [#allocation7], 16
        $region44: #{net_forward.3} parent=31 // pred_fallthru
          _
        %s265 = sand.u32 %s50, 1
        %s266 = scalar_lea.sflag [#allocation4], %s265
        %s267 = sand.u32 %s50, 1
        %s268 = smul.addr %s267, 64
        %s269 = scalar_lea.vmem [#allocation3], %s268
        %p270 = pneg %p63
        %p271 = pneg %p60
        %s272 = sand.u32 %s28, 1
        %s273 = scalar_lea.sflag [#allocation7], %s272
        %s274 = sand.u32 %s76, 1
        %s275 = smul.addr %s274, 64
        %s276 = scalar_lea.vmem [#allocation6], %s275
        %p277 = pneg %p89
        %p278 = pneg %p86
        %p279 = pneg %p110
        %p280 = pneg %p107
        %p281 = pneg %p136
        %p282 = pneg %p133
        %s283 = sand.u32 %s123, 1
        %s284 = scalar_lea.sflag [#allocation5], %s283
        %s285 = sand.u32 %s123, 1
        %s286 = smul.addr %s285, 128
        %s287 = scalar_lea.vmem [#allocation9], %s286
        %p288 = pneg %p162
        %p289 = pneg %p159
        %s290 = sand.u32 %s149, 1
        %s291 = scalar_lea.sflag [#allocation11], %s290
        %s292 = sand.u32 %s149, 1
        %s293 = smul.addr %s292, 128
        %s294 = scalar_lea.vmem [#allocation10], %s293
        %s295 = smul.u32 16, %s32
        %s296 = smul.u32 16, %s33
        %s297 = smul.u32 16, %s32
        %s298 = smul.u32 16, %s32
        %p300 = scmp.eq.s32.totalorder %s33, 0
        // Predicated region
        $region45: #{net_forward.3} parent=31 // pred_check
          %p301 = pneg %p300
        $region46: #{net_forward.3} parent=31 // pred_check_branch
          %303 = sbr.rel (%p301) target = $region48
        $region47: #{net_forward.3} parent=31 // pred_region
          %vm304 = vcmask 64512
          %305 = vst.msk [vmem:[#allocation2] sm:$0xff] %vm304, 0.0
          %306 = vst.msk [vmem:[#allocation2 + $0x8] sm:$0xff] %vm304, 0.0
          %307 = vst.msk [vmem:[#allocation2 + $0x10] sm:$0xff] %vm304, 0.0
          %308 = vst.msk [vmem:[#allocation2 + $0x18] sm:$0xff] %vm304, 0.0
          %309 = vst.msk [vmem:[#allocation2 + $0x20] sm:$0xff] %vm304, 0.0
          %310 = vst.msk [vmem:[#allocation2 + $0x28] sm:$0xff] %vm304, 0.0
          %311 = vst.msk [vmem:[#allocation2 + $0x30] sm:$0xff] %vm304, 0.0
          %312 = vst.msk [vmem:[#allocation2 + $0x38] sm:$0xff] %vm304, 0.0
          %313 = vst.msk [vmem:[#allocation2 + $0x40] sm:$0xff] %vm304, 0.0
          %314 = vst.msk [vmem:[#allocation2 + $0x48] sm:$0xff] %vm304, 0.0
          %315 = vst.msk [vmem:[#allocation2 + $0x50] sm:$0xff] %vm304, 0.0
          %316 = vst.msk [vmem:[#allocation2 + $0x58] sm:$0xff] %vm304, 0.0
          %317 = vst.msk [vmem:[#allocation2 + $0x60] sm:$0xff] %vm304, 0.0
          %318 = vst.msk [vmem:[#allocation2 + $0x68] sm:$0xff] %vm304, 0.0
          %319 = vst.msk [vmem:[#allocation2 + $0x70] sm:$0xff] %vm304, 0.0
          %320 = vst.msk [vmem:[#allocation2 + $0x78] sm:$0xff] %vm304, 0.0
        $region48: #{net_forward.3} parent=31 // pred_fallthru
          _
        %v321 = vld [vmem:[#allocation2] sm:$0xff]
        %v322 = vld [vmem:[#allocation2 + $0x8] sm:$0xff]
        %v323 = vld [vmem:[#allocation2 + $0x10] sm:$0xff]
        %v324 = vld [vmem:[#allocation2 + $0x18] sm:$0xff]
        %v325 = vld [vmem:[#allocation2 + $0x20] sm:$0xff]
        %v326 = vld [vmem:[#allocation2 + $0x28] sm:$0xff]
        %v327 = vld [vmem:[#allocation2 + $0x30] sm:$0xff]
        %v328 = vld [vmem:[#allocation2 + $0x38] sm:$0xff]
        %v329 = vld [vmem:[#allocation2 + $0x40] sm:$0xff]
        %v330 = vld [vmem:[#allocation2 + $0x48] sm:$0xff]
        %v331 = vld [vmem:[#allocation2 + $0x50] sm:$0xff]
        %v332 = vld [vmem:[#allocation2 + $0x58] sm:$0xff]
        %v333 = vld [vmem:[#allocation2 + $0x60] sm:$0xff]
        %v334 = vld [vmem:[#allocation2 + $0x68] sm:$0xff]
        %v335 = vld [vmem:[#allocation2 + $0x70] sm:$0xff]
        %v336 = vld [vmem:[#allocation2 + $0x78] sm:$0xff]
        %v337 = vld [vmem:[%s247] sm:$0xf]
        %v338 = vld [vmem:[%s247 + $0x4] sm:$0xf]
        %v339 = vld [vmem:[%s247 + $0x8] sm:$0xf]
        %v340 = vld [vmem:[%s247 + $0xc] sm:$0xf]
        %v341 = vld [vmem:[%s247 + $0x10] sm:$0xf]
        %v342 = vld [vmem:[%s247 + $0x14] sm:$0xf]
        %v343 = vld [vmem:[%s247 + $0x18] sm:$0xf]
        %v344 = vld [vmem:[%s247 + $0x1c] sm:$0xf]
        %v345 = vld [vmem:[%s247 + $0x20] sm:$0xf]
        %v346 = vld [vmem:[%s247 + $0x24] sm:$0xf]
        %v347 = vld [vmem:[%s247 + $0x28] sm:$0xf]
        %v348 = vld [vmem:[%s247 + $0x2c] sm:$0xf]
        %v349 = vld [vmem:[%s247 + $0x30] sm:$0xf]
        %v350 = vld [vmem:[%s247 + $0x34] sm:$0xf]
        %v351 = vld [vmem:[%s247 + $0x38] sm:$0xf]
        %v352 = vld [vmem:[%s247 + $0x3c] sm:$0xf]
        %v353 = vld [vmem:[%s256] sm:$0xf]
        %v354 = vld [vmem:[%s256 + $0x4] sm:$0xf]
        %v355 = vld [vmem:[%s256 + $0x8] sm:$0xf]
        %v356 = vld [vmem:[%s256 + $0xc] sm:$0xf]
        %v357 = vld [vmem:[%s256 + $0x10] sm:$0xf]
        %v358 = vld [vmem:[%s256 + $0x14] sm:$0xf]
        %v359 = vld [vmem:[%s256 + $0x18] sm:$0xf]
        %v360 = vld [vmem:[%s256 + $0x1c] sm:$0xf]
        %v361 = vld [vmem:[%s256 + $0x20] sm:$0xf]
        %v362 = vld [vmem:[%s256 + $0x24] sm:$0xf]
        %v363 = vld [vmem:[%s256 + $0x28] sm:$0xf]
        %v364 = vld [vmem:[%s256 + $0x2c] sm:$0xf]
        %v365 = vld [vmem:[%s256 + $0x30] sm:$0xf]
        %v366 = vld [vmem:[%s256 + $0x34] sm:$0xf]
        %v367 = vld [vmem:[%s256 + $0x38] sm:$0xf]
        %v368 = vld [vmem:[%s256 + $0x3c] sm:$0xf]
        %v385 = vunpack.c.l.b16 %v337
        %v386 = vunpack.c.l.b16 %v338
        %v387 = vunpack.c.l.b16 %v339
        %v388 = vunpack.c.l.b16 %v340
        %v389 = vunpack.c.l.b16 %v341
        %v390 = vunpack.c.l.b16 %v342
        %v391 = vunpack.c.l.b16 %v343
        %v392 = vunpack.c.l.b16 %v344
        %v393 = vunpack.c.l.b16 %v345
        %v394 = vunpack.c.l.b16 %v346
        %v395 = vunpack.c.l.b16 %v347
        %v396 = vunpack.c.l.b16 %v348
        %v397 = vunpack.c.l.b16 %v349
        %v398 = vunpack.c.l.b16 %v350
        %v399 = vunpack.c.l.b16 %v351
        %v400 = vunpack.c.l.b16 %v352
        %v401 = vpack.c.b16 %v386, %v385
        %v402 = vpack.c.b16 %v388, %v387
        %v403 = vpack.c.b16 %v390, %v389
        %v404 = vpack.c.b16 %v392, %v391
        %v405 = vpack.c.b16 %v394, %v393
        %v406 = vpack.c.b16 %v396, %v395
        %v407 = vpack.c.b16 %v398, %v397
        %v408 = vpack.c.b16 %v400, %v399
        %v433 = vunpack.c.l.b16 %v353
        %v434 = vunpack.c.l.b16 %v354
        %v435 = vunpack.c.l.b16 %v355
        %v436 = vunpack.c.l.b16 %v356
        %v437 = vunpack.c.l.b16 %v357
        %v438 = vunpack.c.l.b16 %v358
        %v439 = vunpack.c.l.b16 %v359
        %v440 = vunpack.c.l.b16 %v360
        %v441 = vunpack.c.l.b16 %v361
        %v442 = vunpack.c.l.b16 %v362
        %v443 = vunpack.c.l.b16 %v363
        %v444 = vunpack.c.l.b16 %v364
        %v445 = vunpack.c.l.b16 %v365
        %v446 = vunpack.c.l.b16 %v366
        %v447 = vunpack.c.l.b16 %v367
        %v448 = vunpack.c.l.b16 %v368
        %v449 = vpack.c.b16 %v434, %v433
        %v450 = vpack.c.b16 %v436, %v435
        %v451 = vpack.c.b16 %v438, %v437
        %v452 = vpack.c.b16 %v440, %v439
        %v453 = vpack.c.b16 %v442, %v441
        %v454 = vpack.c.b16 %v444, %v443
        %v455 = vpack.c.b16 %v446, %v445
        %v456 = vpack.c.b16 %v448, %v447
        %465 = vmatprep.subr.bf16.mxu0 0
        %466 = vmatpush1.bf16.msra.mxu0 %v449
        %467 = vmatprep.subr.bf16.mxu0 0
        %468 = vmatpush1.bf16.msra.mxu0 %v450
        %469 = vmatprep.subr.bf16.mxu0 0
        %470 = vmatpush1.bf16.msra.mxu0 %v451
        %471 = vmatprep.subr.bf16.mxu0 0
        %472 = vmatpush1.bf16.msra.mxu0 %v452
        %473 = vmatprep.subr.bf16.mxu0 0
        %474 = vmatpush1.bf16.msra.mxu0 %v453
        %475 = vmatprep.subr.bf16.mxu0 0
        %476 = vmatpush1.bf16.msra.mxu0 %v454
        %477 = vmatprep.subr.bf16.mxu0 0
        %478 = vmatpush1.bf16.msra.mxu0 %v455
        %479 = vmatprep.subr.bf16.mxu0 0
        %480 = vmatpush1.bf16.msra.mxu0 %v456
        %481 = vmatprep.subr.bf16.mxu0 0
        %482 = vmatpush1.bf16.msra.mxu0 0
        %483 = vmatprep.subr.bf16.mxu0 0
        %484 = vmatpush1.bf16.msra.mxu0 0
        %485 = vmatprep.subr.bf16.mxu0 0
        %486 = vmatpush1.bf16.msra.mxu0 0
        %487 = vmatprep.subr.bf16.mxu0 0
        %488 = vmatpush1.bf16.msra.mxu0 0
        %489 = vmatprep.subr.bf16.mxu0 0
        %490 = vmatpush1.bf16.msra.mxu0 0
        %491 = vmatprep.subr.bf16.mxu0 0
        %492 = vmatpush1.bf16.msra.mxu0 0
        %493 = vmatprep.subr.bf16.mxu0 0
        %494 = vmatpush1.bf16.msra.mxu0 0
        %495 = vmatprep.subr.bf16.mxu0 0
        %496 = vmatpush1.bf16.msra.mxu0 0
        %497 = vmatprep.mubr.bf16.mxu0 0
        %498 = vmatmul.mubr.bf16.gmra.mrb[0].mxu0 %v401
        %v499 = vpop.f32.mrb[0].mxu0
        %v500 = vadd.f32 0.0, %v499
        %v501 = vpop.f32.mrb[0].mxu0
        %v502 = vpop.f32.mrb[0].mxu0
        %v503 = vadd.f32 0.0, %v502
        %v504 = vpop.f32.mrb[0].mxu0
        %505 = vmatprep.mubr.bf16.mxu0 0
        %506 = vmatmul.mubr.bf16.gmra.mrb[0].mxu0 %v402
        %v507 = vpop.f32.mrb[0].mxu0
        %v508 = vadd.f32 0.0, %v507
        %v509 = vpop.f32.mrb[0].mxu0
        %v510 = vpop.f32.mrb[0].mxu0
        %v511 = vadd.f32 0.0, %v510
        %v512 = vpop.f32.mrb[0].mxu0
        %513 = vmatprep.mubr.bf16.mxu0 0
        %514 = vmatmul.mubr.bf16.gmra.mrb[0].mxu0 %v403
        %v515 = vpop.f32.mrb[0].mxu0
        %v516 = vadd.f32 0.0, %v515
        %v517 = vpop.f32.mrb[0].mxu0
        %v518 = vpop.f32.mrb[0].mxu0
        %v519 = vadd.f32 0.0, %v518
        %v520 = vpop.f32.mrb[0].mxu0
        %521 = vmatprep.mubr.bf16.mxu0 0
        %522 = vmatmul.mubr.bf16.gmra.mrb[0].mxu0 %v404
        %v523 = vpop.f32.mrb[0].mxu0
        %v524 = vadd.f32 0.0, %v523
        %v525 = vpop.f32.mrb[0].mxu0
        %v526 = vpop.f32.mrb[0].mxu0
        %v527 = vadd.f32 0.0, %v526
        %v528 = vpop.f32.mrb[0].mxu0
        %529 = vmatprep.mubr.bf16.mxu0 0
        %530 = vmatmul.mubr.bf16.gmra.mrb[0].mxu0 %v405
        %v531 = vpop.f32.mrb[0].mxu0
        %v532 = vadd.f32 0.0, %v531
        %v533 = vpop.f32.mrb[0].mxu0
        %v534 = vpop.f32.mrb[0].mxu0
        %v535 = vadd.f32 0.0, %v534
        %v536 = vpop.f32.mrb[0].mxu0
        %537 = vmatprep.mubr.bf16.mxu0 0
        %538 = vmatmul.mubr.bf16.gmra.mrb[0].mxu0 %v406
        %v539 = vpop.f32.mrb[0].mxu0
        %v540 = vadd.f32 0.0, %v539
        %v541 = vpop.f32.mrb[0].mxu0
        %v542 = vpop.f32.mrb[0].mxu0
        %v543 = vadd.f32 0.0, %v542
        %v544 = vpop.f32.mrb[0].mxu0
        %545 = vmatprep.mubr.bf16.mxu0 0
        %546 = vmatmul.mubr.bf16.gmra.mrb[0].mxu0 %v407
        %v547 = vpop.f32.mrb[0].mxu0
        %v548 = vadd.f32 0.0, %v547
        %v549 = vpop.f32.mrb[0].mxu0
        %v550 = vpop.f32.mrb[0].mxu0
        %v551 = vadd.f32 0.0, %v550
        %v552 = vpop.f32.mrb[0].mxu0
        %553 = vmatprep.mubr.bf16.mxu0 0
        %554 = vmatmul.mubr.bf16.gmra.mrb[0].mxu0 %v408
        %v555 = vpop.f32.mrb[0].mxu0
        %v556 = vadd.f32 0.0, %v555
        %v557 = vpop.f32.mrb[0].mxu0
        %v558 = vpop.f32.mrb[0].mxu0
        %v559 = vadd.f32 0.0, %v558
        %v560 = vpop.f32.mrb[0].mxu0
        %561 = vdwg.mxu0
        %v562 = vadd.f32 %v321, %v500
        %v563 = vadd.f32 %v322, %v503
        %v564 = vadd.f32 %v323, %v508
        %v565 = vadd.f32 %v324, %v511
        %v566 = vadd.f32 %v325, %v516
        %v567 = vadd.f32 %v326, %v519
        %v568 = vadd.f32 %v327, %v524
        %v569 = vadd.f32 %v328, %v527
        %v570 = vadd.f32 %v329, %v532
        %v571 = vadd.f32 %v330, %v535
        %v572 = vadd.f32 %v331, %v540
        %v573 = vadd.f32 %v332, %v543
        %v574 = vadd.f32 %v333, %v548
        %v575 = vadd.f32 %v334, %v551
        %v576 = vadd.f32 %v335, %v556
        %v577 = vadd.f32 %v336, %v559
        %vm578 = vcmask 64512
        %579 = vst.msk [vmem:[#allocation2] sm:$0xff] %vm578, %v562
        %580 = vst.msk [vmem:[#allocation2 + $0x8] sm:$0xff] %vm578, %v563
        %581 = vst.msk [vmem:[#allocation2 + $0x10] sm:$0xff] %vm578, %v564
        %582 = vst.msk [vmem:[#allocation2 + $0x18] sm:$0xff] %vm578, %v565
        %583 = vst.msk [vmem:[#allocation2 + $0x20] sm:$0xff] %vm578, %v566
        %584 = vst.msk [vmem:[#allocation2 + $0x28] sm:$0xff] %vm578, %v567
        %585 = vst.msk [vmem:[#allocation2 + $0x30] sm:$0xff] %vm578, %v568
        %586 = vst.msk [vmem:[#allocation2 + $0x38] sm:$0xff] %vm578, %v569
        %587 = vst.msk [vmem:[#allocation2 + $0x40] sm:$0xff] %vm578, %v570
        %588 = vst.msk [vmem:[#allocation2 + $0x48] sm:$0xff] %vm578, %v571
        %589 = vst.msk [vmem:[#allocation2 + $0x50] sm:$0xff] %vm578, %v572
        %590 = vst.msk [vmem:[#allocation2 + $0x58] sm:$0xff] %vm578, %v573
        %591 = vst.msk [vmem:[#allocation2 + $0x60] sm:$0xff] %vm578, %v574
        %592 = vst.msk [vmem:[#allocation2 + $0x68] sm:$0xff] %vm578, %v575
        %593 = vst.msk [vmem:[#allocation2 + $0x70] sm:$0xff] %vm578, %v576
        %594 = vst.msk [vmem:[#allocation2 + $0x78] sm:$0xff] %vm578, %v577
        %p595 = scmp.eq.s32.totalorder %s33, 1
        // Predicated region
        $region49: #{net_forward.3} parent=31 // pred_check
          %p596 = pneg %p595
        $region50: #{net_forward.3} parent=31 // pred_check_branch
          %598 = sbr.rel (%p596) target = $region52
        $region51: #{net_forward.3} parent=31 // pred_region
          %v599 = vld [vmem:[#allocation2] sm:$0xff]
          %v600 = vld [vmem:[#allocation2 + $0x8] sm:$0xff]
          %v601 = vld [vmem:[#allocation2 + $0x10] sm:$0xff]
          %v602 = vld [vmem:[#allocation2 + $0x18] sm:$0xff]
          %v603 = vld [vmem:[#allocation2 + $0x20] sm:$0xff]
          %v604 = vld [vmem:[#allocation2 + $0x28] sm:$0xff]
          %v605 = vld [vmem:[#allocation2 + $0x30] sm:$0xff]
          %v606 = vld [vmem:[#allocation2 + $0x38] sm:$0xff]
          %v607 = vld [vmem:[#allocation2 + $0x40] sm:$0xff]
          %v608 = vld [vmem:[#allocation2 + $0x48] sm:$0xff]
          %v609 = vld [vmem:[#allocation2 + $0x50] sm:$0xff]
          %v610 = vld [vmem:[#allocation2 + $0x58] sm:$0xff]
          %v611 = vld [vmem:[#allocation2 + $0x60] sm:$0xff]
          %v612 = vld [vmem:[#allocation2 + $0x68] sm:$0xff]
          %v613 = vld [vmem:[#allocation2 + $0x70] sm:$0xff]
          %v614 = vld [vmem:[#allocation2 + $0x78] sm:$0xff]
          %v615 = vld [vmem:[#allocation8] sm:$0x1]
          %v617 = vlaneseq
          %v618 = vshrl.u32 %v617, 7
          %v619 = vsub.s32 0, %v618
          %v620 = vrot.slane %v615, %v619
          %v622 = vadd.f32 %v599, %v620
          %v623 = vadd.f32 %v600, %v620
          %v624 = vadd.f32 %v601, %v620
          %v625 = vadd.f32 %v602, %v620
          %v626 = vadd.f32 %v603, %v620
          %v627 = vadd.f32 %v604, %v620
          %v628 = vadd.f32 %v605, %v620
          %v629 = vadd.f32 %v606, %v620
          %v630 = vadd.f32 %v607, %v620
          %v631 = vadd.f32 %v608, %v620
          %v632 = vadd.f32 %v609, %v620
          %v633 = vadd.f32 %v610, %v620
          %v634 = vadd.f32 %v611, %v620
          %v635 = vadd.f32 %v612, %v620
          %v636 = vadd.f32 %v613, %v620
          %v637 = vadd.f32 %v614, %v620
          %638 = vst.msk [vmem:[%s294] sm:$0xff] %vm578, %v622
          %639 = vst.msk [vmem:[%s294 + $0x8] sm:$0xff] %vm578, %v623
          %640 = vst.msk [vmem:[%s294 + $0x10] sm:$0xff] %vm578, %v624
          %641 = vst.msk [vmem:[%s294 + $0x18] sm:$0xff] %vm578, %v625
          %642 = vst.msk [vmem:[%s294 + $0x20] sm:$0xff] %vm578, %v626
          %643 = vst.msk [vmem:[%s294 + $0x28] sm:$0xff] %vm578, %v627
          %644 = vst.msk [vmem:[%s294 + $0x30] sm:$0xff] %vm578, %v628
          %645 = vst.msk [vmem:[%s294 + $0x38] sm:$0xff] %vm578, %v629
          %646 = vst.msk [vmem:[%s294 + $0x40] sm:$0xff] %vm578, %v630
          %647 = vst.msk [vmem:[%s294 + $0x48] sm:$0xff] %vm578, %v631
          %648 = vst.msk [vmem:[%s294 + $0x50] sm:$0xff] %vm578, %v632
          %649 = vst.msk [vmem:[%s294 + $0x58] sm:$0xff] %vm578, %v633
          %650 = vst.msk [vmem:[%s294 + $0x60] sm:$0xff] %vm578, %v634
          %651 = vst.msk [vmem:[%s294 + $0x68] sm:$0xff] %vm578, %v635
          %652 = vst.msk [vmem:[%s294 + $0x70] sm:$0xff] %vm578, %v636
          %653 = vst.msk [vmem:[%s294 + $0x78] sm:$0xff] %vm578, %v637
          %v654 = vsel %vm578, %v622, -inf
          %655 = vmax.xlane.f32.xlu0 %v654
          %v656 = vpop.xlane.xlu0 %655
          %v657 = vsel %vm578, %v623, -inf
          %658 = vmax.xlane.f32.xlu0 %v657
          %v659 = vpop.xlane.xlu0 %658
          %v660 = vsel %vm578, %v624, -inf
          %661 = vmax.xlane.f32.xlu0 %v660
          %v662 = vpop.xlane.xlu0 %661
          %v663 = vsel %vm578, %v625, -inf
          %664 = vmax.xlane.f32.xlu0 %v663
          %v665 = vpop.xlane.xlu0 %664
          %v666 = vsel %vm578, %v626, -inf
          %667 = vmax.xlane.f32.xlu0 %v666
          %v668 = vpop.xlane.xlu0 %667
          %v669 = vsel %vm578, %v627, -inf
          %670 = vmax.xlane.f32.xlu0 %v669
          %v671 = vpop.xlane.xlu0 %670
          %v672 = vsel %vm578, %v628, -inf
          %673 = vmax.xlane.f32.xlu0 %v672
          %v674 = vpop.xlane.xlu0 %673
          %v675 = vsel %vm578, %v629, -inf
          %676 = vmax.xlane.f32.xlu0 %v675
          %v677 = vpop.xlane.xlu0 %676
          %v678 = vsel %vm578, %v630, -inf
          %679 = vmax.xlane.f32.xlu0 %v678
          %v680 = vpop.xlane.xlu0 %679
          %v681 = vsel %vm578, %v631, -inf
          %682 = vmax.xlane.f32.xlu0 %v681
          %v683 = vpop.xlane.xlu0 %682
          %v684 = vsel %vm578, %v632, -inf
          %685 = vmax.xlane.f32.xlu0 %v684
          %v686 = vpop.xlane.xlu0 %685
          %v687 = vsel %vm578, %v633, -inf
          %688 = vmax.xlane.f32.xlu0 %v687
          %v689 = vpop.xlane.xlu0 %688
          %v690 = vsel %vm578, %v634, -inf
          %691 = vmax.xlane.f32.xlu0 %v690
          %v692 = vpop.xlane.xlu0 %691
          %v693 = vsel %vm578, %v635, -inf
          %694 = vmax.xlane.f32.xlu0 %v693
          %v695 = vpop.xlane.xlu0 %694
          %v696 = vsel %vm578, %v636, -inf
          %697 = vmax.xlane.f32.xlu0 %v696
          %v698 = vpop.xlane.xlu0 %697
          %v699 = vsel %vm578, %v637, -inf
          %700 = vmax.xlane.f32.xlu0 %v699
          %v701 = vpop.xlane.xlu0 %700
          %v702 = vsub.f32 %v622, %v656
          %v703 = vsub.f32 %v623, %v659
          %v704 = vsub.f32 %v624, %v662
          %v705 = vsub.f32 %v625, %v665
          %v706 = vsub.f32 %v626, %v668
          %v707 = vsub.f32 %v627, %v671
          %v708 = vsub.f32 %v628, %v674
          %v709 = vsub.f32 %v629, %v677
          %v710 = vsub.f32 %v630, %v680
          %v711 = vsub.f32 %v631, %v683
          %v712 = vsub.f32 %v632, %v686
          %v713 = vsub.f32 %v633, %v689
          %v714 = vsub.f32 %v634, %v692
          %v715 = vsub.f32 %v635, %v695
          %v716 = vsub.f32 %v636, %v698
          %v717 = vsub.f32 %v637, %v701
          %v718 = vmul.f32 %v702, 1.442695
          %v719 = vpow.pop %v718
          %v720 = vmul.f32 %v703, 1.442695
          %v721 = vpow.pop %v720
          %v722 = vmul.f32 %v704, 1.442695
          %v723 = vpow.pop %v722
          %v724 = vmul.f32 %v705, 1.442695
          %v725 = vpow.pop %v724
          %v726 = vmul.f32 %v706, 1.442695
          %v727 = vpow.pop %v726
          %v728 = vmul.f32 %v707, 1.442695
          %v729 = vpow.pop %v728
          %v730 = vmul.f32 %v708, 1.442695
          %v731 = vpow.pop %v730
          %v732 = vmul.f32 %v709, 1.442695
          %v733 = vpow.pop %v732
          %v734 = vmul.f32 %v710, 1.442695
          %v735 = vpow.pop %v734
          %v736 = vmul.f32 %v711, 1.442695
          %v737 = vpow.pop %v736
          %v738 = vmul.f32 %v712, 1.442695
          %v739 = vpow.pop %v738
          %v740 = vmul.f32 %v713, 1.442695
          %v741 = vpow.pop %v740
          %v742 = vmul.f32 %v714, 1.442695
          %v743 = vpow.pop %v742
          %v744 = vmul.f32 %v715, 1.442695
          %v745 = vpow.pop %v744
          %v746 = vmul.f32 %v716, 1.442695
          %v747 = vpow.pop %v746
          %v748 = vmul.f32 %v717, 1.442695
          %v749 = vpow.pop %v748
          %v750 = vsel %vm578, %v719, 0.0
          %751 = vadd.xlane.f32.xlu0 %v750
          %v752 = vpop.xlane.xlu0 %751
          %v753 = vsel %vm578, %v721, 0.0
          %754 = vadd.xlane.f32.xlu0 %v753
          %v755 = vpop.xlane.xlu0 %754
          %v756 = vsel %vm578, %v723, 0.0
          %757 = vadd.xlane.f32.xlu0 %v756
          %v758 = vpop.xlane.xlu0 %757
          %v759 = vsel %vm578, %v725, 0.0
          %760 = vadd.xlane.f32.xlu0 %v759
          %v761 = vpop.xlane.xlu0 %760
          %v762 = vsel %vm578, %v727, 0.0
          %763 = vadd.xlane.f32.xlu0 %v762
          %v764 = vpop.xlane.xlu0 %763
          %v765 = vsel %vm578, %v729, 0.0
          %766 = vadd.xlane.f32.xlu0 %v765
          %v767 = vpop.xlane.xlu0 %766
          %v768 = vsel %vm578, %v731, 0.0
          %769 = vadd.xlane.f32.xlu0 %v768
          %v770 = vpop.xlane.xlu0 %769
          %v771 = vsel %vm578, %v733, 0.0
          %772 = vadd.xlane.f32.xlu0 %v771
          %v773 = vpop.xlane.xlu0 %772
          %v774 = vsel %vm578, %v735, 0.0
          %775 = vadd.xlane.f32.xlu0 %v774
          %v776 = vpop.xlane.xlu0 %775
          %v777 = vsel %vm578, %v737, 0.0
          %778 = vadd.xlane.f32.xlu0 %v777
          %v779 = vpop.xlane.xlu0 %778
          %v780 = vsel %vm578, %v739, 0.0
          %781 = vadd.xlane.f32.xlu0 %v780
          %v782 = vpop.xlane.xlu0 %781
          %v783 = vsel %vm578, %v741, 0.0
          %784 = vadd.xlane.f32.xlu0 %v783
          %v785 = vpop.xlane.xlu0 %784
          %v786 = vsel %vm578, %v743, 0.0
          %787 = vadd.xlane.f32.xlu0 %v786
          %v788 = vpop.xlane.xlu0 %787
          %v789 = vsel %vm578, %v745, 0.0
          %790 = vadd.xlane.f32.xlu0 %v789
          %v791 = vpop.xlane.xlu0 %790
          %v792 = vsel %vm578, %v747, 0.0
          %793 = vadd.xlane.f32.xlu0 %v792
          %v794 = vpop.xlane.xlu0 %793
          %v795 = vsel %vm578, %v749, 0.0
          %796 = vadd.xlane.f32.xlu0 %v795
          %v797 = vpop.xlane.xlu0 %796
          %v798 = vlog2.pop %v752
          %v799 = vmul.f32 %v798, 0.6931472
          %v800 = vlog2.pop %v755
          %v801 = vmul.f32 %v800, 0.6931472
          %v802 = vlog2.pop %v758
          %v803 = vmul.f32 %v802, 0.6931472
          %v804 = vlog2.pop %v761
          %v805 = vmul.f32 %v804, 0.6931472
          %v806 = vlog2.pop %v764
          %v807 = vmul.f32 %v806, 0.6931472
          %v808 = vlog2.pop %v767
          %v809 = vmul.f32 %v808, 0.6931472
          %v810 = vlog2.pop %v770
          %v811 = vmul.f32 %v810, 0.6931472
          %v812 = vlog2.pop %v773
          %v813 = vmul.f32 %v812, 0.6931472
          %v814 = vlog2.pop %v776
          %v815 = vmul.f32 %v814, 0.6931472
          %v816 = vlog2.pop %v779
          %v817 = vmul.f32 %v816, 0.6931472
          %v818 = vlog2.pop %v782
          %v819 = vmul.f32 %v818, 0.6931472
          %v820 = vlog2.pop %v785
          %v821 = vmul.f32 %v820, 0.6931472
          %v822 = vlog2.pop %v788
          %v823 = vmul.f32 %v822, 0.6931472
          %v824 = vlog2.pop %v791
          %v825 = vmul.f32 %v824, 0.6931472
          %v826 = vlog2.pop %v794
          %v827 = vmul.f32 %v826, 0.6931472
          %v828 = vlog2.pop %v797
          %v829 = vmul.f32 %v828, 0.6931472
          %v830 = vsub.f32 %v702, %v799
          %v831 = vsub.f32 %v703, %v801
          %v832 = vsub.f32 %v704, %v803
          %v833 = vsub.f32 %v705, %v805
          %v834 = vsub.f32 %v706, %v807
          %v835 = vsub.f32 %v707, %v809
          %v836 = vsub.f32 %v708, %v811
          %v837 = vsub.f32 %v709, %v813
          %v838 = vsub.f32 %v710, %v815
          %v839 = vsub.f32 %v711, %v817
          %v840 = vsub.f32 %v712, %v819
          %v841 = vsub.f32 %v713, %v821
          %v842 = vsub.f32 %v714, %v823
          %v843 = vsub.f32 %v715, %v825
          %v844 = vsub.f32 %v716, %v827
          %v845 = vsub.f32 %v717, %v829
          %846 = vst.msk [vmem:[%s287] sm:$0xff] %vm578, %v830
          %847 = vst.msk [vmem:[%s287 + $0x8] sm:$0xff] %vm578, %v831
          %848 = vst.msk [vmem:[%s287 + $0x10] sm:$0xff] %vm578, %v832
          %849 = vst.msk [vmem:[%s287 + $0x18] sm:$0xff] %vm578, %v833
          %850 = vst.msk [vmem:[%s287 + $0x20] sm:$0xff] %vm578, %v834
          %851 = vst.msk [vmem:[%s287 + $0x28] sm:$0xff] %vm578, %v835
          %852 = vst.msk [vmem:[%s287 + $0x30] sm:$0xff] %vm578, %v836
          %853 = vst.msk [vmem:[%s287 + $0x38] sm:$0xff] %vm578, %v837
          %854 = vst.msk [vmem:[%s287 + $0x40] sm:$0xff] %vm578, %v838
          %855 = vst.msk [vmem:[%s287 + $0x48] sm:$0xff] %vm578, %v839
          %856 = vst.msk [vmem:[%s287 + $0x50] sm:$0xff] %vm578, %v840
          %857 = vst.msk [vmem:[%s287 + $0x58] sm:$0xff] %vm578, %v841
          %858 = vst.msk [vmem:[%s287 + $0x60] sm:$0xff] %vm578, %v842
          %859 = vst.msk [vmem:[%s287 + $0x68] sm:$0xff] %vm578, %v843
          %860 = vst.msk [vmem:[%s287 + $0x70] sm:$0xff] %vm578, %v844
          %861 = vst.msk [vmem:[%s287 + $0x78] sm:$0xff] %vm578, %v845
        $region52: #{net_forward.3} parent=31 // pred_fallthru
          _
        %s862 = sand.u32 %s123, 1
        %s863 = scalar_lea.sflag [#allocation5], %s862
        %s864 = sand.u32 %s123, 1
        %s865 = smul.addr %s864, 128
        %s866 = scalar_lea.vmem [#allocation9], %s865
        %s867 = sand.u32 %s149, 1
        %s868 = scalar_lea.sflag [#allocation11], %s867
        %s869 = sand.u32 %s149, 1
        %s870 = smul.addr %s869, 128
        %s871 = scalar_lea.vmem [#allocation10], %s870
        // Predicated region
        $region53: #{net_forward.3} parent=31 // pred_check
          %p872 = pneg %p133
        $region54: #{net_forward.3} parent=31 // pred_check_branch
          %874 = sbr.rel (%p872) target = $region56
        $region55: #{net_forward.3} parent=31 // pred_region
          %s875 = smul.u32 16, %s32
          %s877 = ssub.s32 2048, 2048
          %878 = vsyncadd %s863, %s877
          %s879 = smul.addr %s875, 128
          %s880 = scalar_lea.hbm %s3, %s879
          %s881 = sshll.u32 %s866, 4
          %s882 = int_to_ptr.vmem [resolvable:$true] %s881
          %887 = dma.vmem_to_hbm [thread:$0]  %s882, 2048, %s880, %s863, 128, 128, 8
        $region56: #{net_forward.3} parent=31 // pred_fallthru
          _
        // Predicated region
        $region57: #{net_forward.3} parent=31 // pred_check
          %p888 = pneg %p159
        $region58: #{net_forward.3} parent=31 // pred_check_branch
          %890 = sbr.rel (%p888) target = $region60
        $region59: #{net_forward.3} parent=31 // pred_region
          %s891 = smul.u32 16, %s32
          %s893 = ssub.s32 2048, 2048
          %894 = vsyncadd %s868, %s893
          %s895 = smul.addr %s891, 128
          %s896 = scalar_lea.hbm %s4, %s895
          %s897 = sshll.u32 %s871, 4
          %s898 = int_to_ptr.vmem [resolvable:$true] %s897
          %903 = dma.vmem_to_hbm [thread:$0]  %s898, 2048, %s896, %s868, 128, 128, 8
        $region60: #{net_forward.3} parent=31 // pred_fallthru
          _
      $region32: #{net_forward.3} parent=5 // pred_fallthru
        _
      %p904 = scmp.le.s32.totalorder 2, %s23
      // Predicated region
      $region61: #{net_forward.3} parent=5 // pred_check
        %p905 = pneg %p904
      $region62: #{net_forward.3} parent=5 // pred_check_branch
        %907 = sbr.rel (%p905) target = $region64
      $region63: #{net_forward.3} parent=5 // pred_region
        %s908 = ssub.s32 %s23, 2
        // Predicated region
        $region65: #{net_forward.3} parent=63 // pred_check
          %p909 = pneg %p139
        $region66: #{net_forward.3} parent=63 // pred_check_branch
          %911 = sbr.rel (%p909) target = $region68
        $region67: #{net_forward.3} parent=63 // pred_region
          %s912 = sand.u32 %s124, 1
          %s913 = scalar_lea.sflag [#allocation5], %s912
          %s914 = sand.u32 %s124, 1
          %s915 = smul.addr %s914, 128
          %s916 = scalar_lea.vmem [#allocation9], %s915
          %917 = dma.done %s913, 2048
        $region68: #{net_forward.3} parent=63 // pred_fallthru
          _
        // Predicated region
        $region69: #{net_forward.3} parent=63 // pred_check
          %p918 = pneg %p165
        $region70: #{net_forward.3} parent=63 // pred_check_branch
          %920 = sbr.rel (%p918) target = $region72
        $region71: #{net_forward.3} parent=63 // pred_region
          %s921 = sand.u32 %s150, 1
          %s922 = scalar_lea.sflag [#allocation11], %s921
          %s923 = sand.u32 %s150, 1
          %s924 = smul.addr %s923, 128
          %s925 = scalar_lea.vmem [#allocation10], %s924
          %926 = dma.done %s922, 2048
        $region72: #{net_forward.3} parent=63 // pred_fallthru
          _
      $region64: #{net_forward.3} parent=5 // pred_fallthru
        _
    $region6: #{net_forward.3} parent=1 // loop_footer
      %s27 = sadd.s32 1, %s23
    $region7: #{net_forward.3} parent=1 // loop_footer_branch
      %22 = sbr.rel target = $region3
    $region8: #{net_forward.3} parent=1 // loop_exit
      _
    %927 = vsyncpa [#allocation4], 1
    %s928 = scalar_lea.sflag [#allocation4], 1
    %929 = vsyncpa %s928, 1
    %930 = vsyncpa [#allocation7], 1
    %s931 = scalar_lea.sflag [#allocation7], 1
    %932 = vsyncpa %s931, 1
    %933 = vsyncpa [#allocation5], 1
    %s934 = scalar_lea.sflag [#allocation5], 1
    %935 = vsyncpa %s934, 1
    %936 = vsyncpa [#allocation11], 1
    %s937 = scalar_lea.sflag [#allocation11], 1
    %938 = vsyncpa %s937, 1

</llo_original>
